<compile_context>
chip_gen: v7x
topology: tpu7x:2x2x1
jax: 0.10.0
libtpu: 0.0.40
codegen_flags: <defaults>
</compile_context>

<pallas_src>
import functools
import math

import jax
import jax.numpy as jnp
import numpy as np
from jax.experimental import pallas as pl
from jax.experimental.pallas import tpu as pltpu


def _sliding_attn_kernel(x_ref, wqkv_ref, bqkv_ref, wo_ref, bo_ref, o_ref,
                         *, num_heads, head_dim, window_half):
    bb, S, E = x_ref.shape
    E_pad = wo_ref.shape[1]
    cdt = x_ref.dtype  # MXU operand dtype (f32 or bf16); accumulation is f32

    # ---- fused QKV projection: one MXU pass, f32 accumulate -----------------
    # Softmax scale is pre-folded into the q columns of wqkv / bqkv.
    x2d = x_ref[...].reshape(bb * S, E)
    qkv = jnp.dot(x2d, wqkv_ref[...], preferred_element_type=jnp.float32)
    qkv = qkv + bqkv_ref[...].astype(jnp.float32)              # (bb*S, 3E)

    # ---- split heads into a leading batch axis ------------------------------
    # (bb*S, E) column-slices -> stacked (H, bb*S, hd) -> (H*bb, S, hd), so both
    # attention matmuls run as single batched einsums.
    def heads(base):
        hs = [qkv[:, base + h * head_dim: base + (h + 1) * head_dim]
              for h in range(num_heads)]                       # (bb*S, hd) each
        t = jnp.stack(hs, axis=0)                              # (H, bb*S, hd)
        return t.reshape(num_heads * bb, S, head_dim).astype(cdt)

    qh = heads(0)
    kh = heads(E)
    vh = heads(2 * E)

    # ---- scores + in-kernel sliding-window mask ------------------------------
    scores = jnp.einsum('bqd,bkd->bqk', qh, kh,
                        preferred_element_type=jnp.float32)    # (H*bb, S, S)

    rows = jax.lax.broadcasted_iota(jnp.int32, (S, S), 0)
    cols = jax.lax.broadcasted_iota(jnp.int32, (S, S), 1)
    inside = jnp.abs(rows - cols) <= window_half
    scores = jnp.where(inside[None, :, :], scores, -jnp.inf)

    # ---- numerically-stable softmax (f32); divide on the EUP -----------------
    m = jnp.max(scores, axis=-1, keepdims=True)
    p = jnp.exp(scores - m)
    denom = jnp.sum(p, axis=-1, keepdims=True)
    attn = p * pl.reciprocal(denom, approx=True)

    # ---- attn @ V (batched over heads) ---------------------------------------
    ctx = jnp.einsum('bqk,bkd->bqd', attn.astype(cdt), vh,
                     preferred_element_type=jnp.float32)       # (H*bb, S, hd)

    # ---- merge heads back to (bb*S, E): leading-dim reshape + one lane concat
    ctx4 = ctx.reshape(num_heads, bb, S, head_dim)
    merged = jnp.concatenate([ctx4[h] for h in range(num_heads)], axis=-1)
    merged = merged.reshape(bb * S, E).astype(cdt)

    # ---- output projection (lane-dense, padded N) ----------------------------
    out = jnp.dot(merged, wo_ref[...], preferred_element_type=jnp.float32)
    out = out + bo_ref[...].astype(jnp.float32)
    o_ref[...] = out.reshape(bb, S, E_pad).astype(o_ref.dtype)


def make_params(key, embed_dim):
    # Synthetic parameters mirroring nn.MultiheadAttention:
    # in_proj_weight (3E, E), in_proj_bias (3E,), out_proj weight (E, E) + bias (E,).
    ks = jax.random.split(key, 4)
    in_proj_w = jax.random.normal(ks[0], (3 * embed_dim, embed_dim), jnp.float32) * 0.05
    in_proj_b = jax.random.normal(ks[1], (3 * embed_dim,), jnp.float32) * 0.05
    out_w = jax.random.normal(ks[2], (embed_dim, embed_dim), jnp.float32) * 0.05
    out_b = jax.random.normal(ks[3], (embed_dim,), jnp.float32) * 0.05
    return in_proj_w, in_proj_b, out_w, out_b


def prepare_kernel_params(params, num_heads, mxu_dtype):
    in_proj_w, in_proj_b, out_w, out_b = params
    E = out_w.shape[0]
    head_dim = E // num_heads
    scale = 1.0 / math.sqrt(head_dim)

    wq, wk, wv = jnp.split(in_proj_w, 3, axis=0)     # each (E, E)
    bq, bk, bv = jnp.split(in_proj_b, 3)             # each (E,)

    # Fold the 1/sqrt(head_dim) softmax scale into the q projection (weights+bias).
    wq = wq * scale
    bq = bq * scale

    w_qkv_t = jnp.concatenate([wq.T, wk.T, wv.T], axis=1)            # (E, 3E)
    b_qkv = jnp.concatenate([bq, bk, bv]).reshape(1, 3 * E)          # (1, 3E)

    # Pad the output-projection N dim to a multiple of 128 for lane-dense stores.
    E_pad = ((E + 127) // 128) * 128
    wo_t = jnp.zeros((E, E_pad), jnp.float32).at[:, :E].set(out_w.T)
    bo = jnp.zeros((1, E_pad), jnp.float32).at[:, :E].set(out_b.reshape(1, E))

    return (w_qkv_t.astype(mxu_dtype), b_qkv, wo_t.astype(mxu_dtype), bo)


def sliding_attention(x, token_ids, params, *, num_heads, window_size=16,
                      mxu_dtype=jnp.float32, batch_block=None):
    # token_ids / sentence_breaking_token_ids do not affect the forward pass
    # (the mask is purely positional), accepted for interface parity only.
    del token_ids
    B, S, E = x.shape
    head_dim = E // num_heads
    bb = B if batch_block is None else batch_block
    assert B % bb == 0, "batch must divide evenly into batch blocks"

    w_qkv_t, b_qkv, wo_t, bo = prepare_kernel_params(params, num_heads, mxu_dtype)
    E_pad = wo_t.shape[1]

    kernel = functools.partial(
        _sliding_attn_kernel,
        num_heads=num_heads, head_dim=head_dim, window_half=window_size // 2)

    out = pl.pallas_call(
        kernel,
        out_shape=jax.ShapeDtypeStruct((B, S, E_pad), jnp.float32),
        grid_spec=pltpu.PrefetchScalarGridSpec(
            num_scalar_prefetch=0,
            grid=(B // bb,),
            in_specs=[
                pl.BlockSpec((bb, S, E), lambda i: (i, 0, 0)),     # x
                pl.BlockSpec((E, 3 * E), lambda i: (0, 0)),        # Wqkv^T (scaled q)
                pl.BlockSpec((1, 3 * E), lambda i: (0, 0)),        # b_qkv
                pl.BlockSpec((E, E_pad), lambda i: (0, 0)),        # Wo^T (lane-padded)
                pl.BlockSpec((1, E_pad), lambda i: (0, 0)),        # bo
            ],
            out_specs=pl.BlockSpec((bb, S, E_pad), lambda i: (i, 0, 0)),
        ),
        compiler_params=pltpu.CompilerParams(
            dimension_semantics=("parallel",)),
    )(x.astype(mxu_dtype), w_qkv_t, b_qkv, wo_t, bo)

    return out[..., :E]


def reference(x, params, *, num_heads, window_size=16):
    # Pure-JAX replica of nn.MultiheadAttention(batch_first=True) with the
    # additive sliding-window mask from the PyTorch module.
    in_proj_w, in_proj_b, out_w, out_b = params
    B, S, E = x.shape
    hd = E // num_heads
    wq, wk, wv = jnp.split(in_proj_w, 3, axis=0)
    bq, bk, bv = jnp.split(in_proj_b, 3)

    half = window_size // 2
    rows = jnp.arange(S)[:, None]
    cols = jnp.arange(S)[None, :]
    mask = jnp.where(jnp.abs(rows - cols) <= half, 0.0, -jnp.inf)

    q = x @ wq.T + bq
    k = x @ wk.T + bk
    v = x @ wv.T + bv

    def split(t):  # (B, S, E) -> (B, H, S, hd)
        return t.reshape(B, S, num_heads, hd).transpose(0, 2, 1, 3)

    qh, kh, vh = split(q), split(k), split(v)
    scores = jnp.einsum("bhqd,bhkd->bhqk", qh, kh) / math.sqrt(hd)
    scores = scores + mask[None, None, :, :]
    attn = jax.nn.softmax(scores, axis=-1)
    out = jnp.einsum("bhqk,bhkd->bhqd", attn, vh)
    out = out.transpose(0, 2, 1, 3).reshape(B, S, E)
    return out @ out_w.T + out_b


if __name__ == "__main__":
    B, S, E, H = 2, 32, 32, 4
    key = jax.random.PRNGKey(0)
    k_x, k_p, k_t = jax.random.split(key, 3)

    x = jax.random.normal(k_x, (B, S, E), jnp.float32)
    token_ids = jax.random.randint(k_t, (B, S), 0, 100)
    params = make_params(k_p, E)

    ref = reference(x, params, num_heads=H, window_size=16)

    # f32 MXU operands (exact path) -- tolerance covers the approx reciprocal.
    out = sliding_attention(x, token_ids, params, num_heads=H, window_size=16)
    out = jax.block_until_ready(out)
    np.testing.assert_allclose(np.asarray(out), np.asarray(ref),
                               atol=2e-3, rtol=2e-3)

    # bf16 MXU operands (v6e/v7x fast path); softmax math stays f32 in-kernel.
    out_bf16 = sliding_attention(x, token_ids, params, num_heads=H,
                                 window_size=16, mxu_dtype=jnp.bfloat16)
    out_bf16 = jax.block_until_ready(out_bf16)
    np.testing.assert_allclose(np.asarray(out_bf16), np.asarray(ref),
                               atol=5e-2, rtol=5e-2)

    print("KERNEL_OK")
</pallas_src>

<mosaic_0001>
module attributes {stable_mosaic.version = 11 : i64} {
  func.func @_sliding_attn_kernel(%arg0: i32, %arg1: memref<2x32x32xf32, #tpu.memory_space<vmem>>, %arg2: memref<32x96xf32, #tpu.memory_space<vmem>>, %arg3: memref<1x96xf32, #tpu.memory_space<vmem>>, %arg4: memref<32x128xf32, #tpu.memory_space<vmem>>, %arg5: memref<1x128xf32, #tpu.memory_space<vmem>>, %arg6: memref<2x32x128xf32, #tpu.memory_space<vmem>>) attributes {dimension_semantics = [#tpu.dimension_semantics<parallel>], iteration_bounds = array<i64: 1>, scalar_prefetch = 0 : i64, scratch_operands = 0 : i64, tpu.core_type = #tpu.core_type<tc>, window_params = [{transform_indices = @transform_0, window_bounds = array<i64: 2, 32, 32>}, {pipeline_mode = #tpu.pipeline_mode<synchronous>, transform_indices = @transform_1, window_bounds = array<i64: 32, 96>}, {pipeline_mode = #tpu.pipeline_mode<synchronous>, transform_indices = @transform_2, window_bounds = array<i64: 1, 96>}, {pipeline_mode = #tpu.pipeline_mode<synchronous>, transform_indices = @transform_3, window_bounds = array<i64: 32, 128>}, {pipeline_mode = #tpu.pipeline_mode<synchronous>, transform_indices = @transform_4, window_bounds = array<i64: 1, 128>}, {transform_indices = @transform_5, window_bounds = array<i64: 2, 32, 128>}]} {
    %c0 = arith.constant 0 : index
    %c0_0 = arith.constant 0 : index
    %c0_1 = arith.constant 0 : index
    %0 = vector.load %arg1[%c0, %c0_0, %c0_1] : memref<2x32x32xf32, #tpu.memory_space<vmem>>, vector<2x32x32xf32>
    %1 = vector.shape_cast %0 : vector<2x32x32xf32> to vector<64x32xf32>
    %c0_2 = arith.constant 0 : index
    %c0_3 = arith.constant 0 : index
    %2 = vector.load %arg2[%c0_2, %c0_3] : memref<32x96xf32, #tpu.memory_space<vmem>>, vector<32x96xf32>
    %cst = arith.constant dense<0.000000e+00> : vector<64x96xf32>
    %3 = tpu.matmul %1, %2, %cst {dimension_numbers = #tpu.dot_dimension_numbers<[1], [0], [0], [1], [0, 0, 1, 1], [], []>} : vector<64x32xf32>, vector<32x96xf32>, vector<64x96xf32> -> vector<64x96xf32>
    %c0_4 = arith.constant 0 : index
    %c0_5 = arith.constant 0 : index
    %4 = vector.load %arg3[%c0_4, %c0_5] : memref<1x96xf32, #tpu.memory_space<vmem>>, vector<1x96xf32>
    %5 = vector.broadcast %4 : vector<1x96xf32> to vector<64x96xf32>
    %6 = arith.addf %3, %5 : vector<64x96xf32>
    %7 = vector.extract_strided_slice %6 {offsets = [0, 0], sizes = [64, 8], strides = [1, 1]} : vector<64x96xf32> to vector<64x8xf32>
    %8 = vector.extract_strided_slice %6 {offsets = [0, 8], sizes = [64, 8], strides = [1, 1]} : vector<64x96xf32> to vector<64x8xf32>
    %9 = vector.extract_strided_slice %6 {offsets = [0, 16], sizes = [64, 8], strides = [1, 1]} : vector<64x96xf32> to vector<64x8xf32>
    %10 = vector.extract_strided_slice %6 {offsets = [0, 24], sizes = [64, 8], strides = [1, 1]} : vector<64x96xf32> to vector<64x8xf32>
    %11 = vector.shape_cast %7 : vector<64x8xf32> to vector<1x64x8xf32>
    %12 = vector.shape_cast %8 : vector<64x8xf32> to vector<1x64x8xf32>
    %13 = vector.shape_cast %9 : vector<64x8xf32> to vector<1x64x8xf32>
    %14 = vector.shape_cast %10 : vector<64x8xf32> to vector<1x64x8xf32>
    %15 = tpu.concatenate %11, %12, %13, %14 in 0 : vector<1x64x8xf32>, vector<1x64x8xf32>, vector<1x64x8xf32>, vector<1x64x8xf32> -> vector<4x64x8xf32>
    %16 = vector.shape_cast %15 : vector<4x64x8xf32> to vector<8x32x8xf32>
    %17 = vector.extract_strided_slice %6 {offsets = [0, 32], sizes = [64, 8], strides = [1, 1]} : vector<64x96xf32> to vector<64x8xf32>
    %18 = vector.extract_strided_slice %6 {offsets = [0, 40], sizes = [64, 8], strides = [1, 1]} : vector<64x96xf32> to vector<64x8xf32>
    %19 = vector.extract_strided_slice %6 {offsets = [0, 48], sizes = [64, 8], strides = [1, 1]} : vector<64x96xf32> to vector<64x8xf32>
    %20 = vector.extract_strided_slice %6 {offsets = [0, 56], sizes = [64, 8], strides = [1, 1]} : vector<64x96xf32> to vector<64x8xf32>
    %21 = vector.shape_cast %17 : vector<64x8xf32> to vector<1x64x8xf32>
    %22 = vector.shape_cast %18 : vector<64x8xf32> to vector<1x64x8xf32>
    %23 = vector.shape_cast %19 : vector<64x8xf32> to vector<1x64x8xf32>
    %24 = vector.shape_cast %20 : vector<64x8xf32> to vector<1x64x8xf32>
    %25 = tpu.concatenate %21, %22, %23, %24 in 0 : vector<1x64x8xf32>, vector<1x64x8xf32>, vector<1x64x8xf32>, vector<1x64x8xf32> -> vector<4x64x8xf32>
    %26 = vector.shape_cast %25 : vector<4x64x8xf32> to vector<8x32x8xf32>
    %27 = vector.extract_strided_slice %6 {offsets = [0, 64], sizes = [64, 8], strides = [1, 1]} : vector<64x96xf32> to vector<64x8xf32>
    %28 = vector.extract_strided_slice %6 {offsets = [0, 72], sizes = [64, 8], strides = [1, 1]} : vector<64x96xf32> to vector<64x8xf32>
    %29 = vector.extract_strided_slice %6 {offsets = [0, 80], sizes = [64, 8], strides = [1, 1]} : vector<64x96xf32> to vector<64x8xf32>
    %30 = vector.extract_strided_slice %6 {offsets = [0, 88], sizes = [64, 8], strides = [1, 1]} : vector<64x96xf32> to vector<64x8xf32>
    %31 = vector.shape_cast %27 : vector<64x8xf32> to vector<1x64x8xf32>
    %32 = vector.shape_cast %28 : vector<64x8xf32> to vector<1x64x8xf32>
    %33 = vector.shape_cast %29 : vector<64x8xf32> to vector<1x64x8xf32>
    %34 = vector.shape_cast %30 : vector<64x8xf32> to vector<1x64x8xf32>
    %35 = tpu.concatenate %31, %32, %33, %34 in 0 : vector<1x64x8xf32>, vector<1x64x8xf32>, vector<1x64x8xf32>, vector<1x64x8xf32> -> vector<4x64x8xf32>
    %36 = vector.shape_cast %35 : vector<4x64x8xf32> to vector<8x32x8xf32>
    "tpu.trace_start"() <{level = 10 : i32, message = "bqd,bkd->bqk"}> : () -> ()
    %cst_6 = arith.constant dense<0.000000e+00> : vector<8x32x32xf32>
    %37 = tpu.matmul %16, %26, %cst_6 {dimension_numbers = #tpu.dot_dimension_numbers<[2], [2], [1], [1], [0, 0, 0, 1, 1, 1], [0], [0]>} : vector<8x32x8xf32>, vector<8x32x8xf32>, vector<8x32x32xf32> -> vector<8x32x32xf32>
    "tpu.trace_stop"() : () -> ()
    %38 = tpu.iota {dimensions = array<i32: 0>} : vector<32x32xi32>
    %39 = tpu.iota {dimensions = array<i32: 1>} : vector<32x32xi32>
    %40 = arith.subi %38, %39 : vector<32x32xi32>
    %41 = math.absi %40 : vector<32x32xi32>
    %c8_i32 = arith.constant 8 : i32
    %42 = vector.broadcast %c8_i32 : i32 to vector<32x32xi32>
    %43 = arith.cmpi sle, %41, %42 : vector<32x32xi32>
    %44 = vector.shape_cast %43 : vector<32x32xi1> to vector<1x32x32xi1>
    %cst_7 = arith.constant 0xFF800000 : f32
    %45 = vector.shape_cast %44 : vector<1x32x32xi1> to vector<1x32x32xi1>
    %46 = vector.broadcast %45 : vector<1x32x32xi1> to vector<8x32x32xi1>
    %47 = vector.broadcast %cst_7 : f32 to vector<8x32x32xf32>
    %48 = arith.select %46, %37, %47 : vector<8x32x32xi1>, vector<8x32x32xf32>
    %cst_8 = arith.constant dense<0xFF800000> : vector<8x32xf32>
    %49 = vector.multi_reduction <maximumf>, %48, %cst_8 [2] : vector<8x32x32xf32> to vector<8x32xf32>
    %50 = vector.shape_cast %49 : vector<8x32xf32> to vector<8x32x1xf32>
    %51 = vector.broadcast %50 : vector<8x32x1xf32> to vector<8x32x32xf32>
    %52 = arith.subf %48, %51 : vector<8x32x32xf32>
    %53 = math.exp %52 : vector<8x32x32xf32>
    %cst_9 = arith.constant dense<0.000000e+00> : vector<8x32xf32>
    %54 = vector.multi_reduction <add>, %53, %cst_9 [2] : vector<8x32x32xf32> to vector<8x32xf32>
    %55 = vector.shape_cast %54 : vector<8x32xf32> to vector<8x32x1xf32>
    %56 = tpu.reciprocal %55 {approx = true} : vector<8x32x1xf32> -> vector<8x32x1xf32>
    %57 = vector.broadcast %56 : vector<8x32x1xf32> to vector<8x32x32xf32>
    %58 = arith.mulf %53, %57 : vector<8x32x32xf32>
    "tpu.trace_start"() <{level = 10 : i32, message = "bqk,bkd->bqd"}> : () -> ()
    %cst_10 = arith.constant dense<0.000000e+00> : vector<8x32x8xf32>
    %59 = tpu.matmul %58, %36, %cst_10 {dimension_numbers = #tpu.dot_dimension_numbers<[2], [1], [1], [2], [0, 0, 0, 1, 1, 2], [0], [0]>} : vector<8x32x32xf32>, vector<8x32x8xf32>, vector<8x32x8xf32> -> vector<8x32x8xf32>
    "tpu.trace_stop"() : () -> ()
    %60 = vector.shape_cast %59 : vector<8x32x8xf32> to vector<4x2x32x8xf32>
    %61 = vector.extract_strided_slice %60 {offsets = [0, 0, 0, 0], sizes = [1, 2, 32, 8], strides = [1, 1, 1, 1]} : vector<4x2x32x8xf32> to vector<1x2x32x8xf32>
    %62 = vector.shape_cast %61 : vector<1x2x32x8xf32> to vector<2x32x8xf32>
    %63 = vector.extract_strided_slice %60 {offsets = [1, 0, 0, 0], sizes = [1, 2, 32, 8], strides = [1, 1, 1, 1]} : vector<4x2x32x8xf32> to vector<1x2x32x8xf32>
    %64 = vector.shape_cast %63 : vector<1x2x32x8xf32> to vector<2x32x8xf32>
    %65 = vector.extract_strided_slice %60 {offsets = [2, 0, 0, 0], sizes = [1, 2, 32, 8], strides = [1, 1, 1, 1]} : vector<4x2x32x8xf32> to vector<1x2x32x8xf32>
    %66 = vector.shape_cast %65 : vector<1x2x32x8xf32> to vector<2x32x8xf32>
    %67 = vector.extract_strided_slice %60 {offsets = [3, 0, 0, 0], sizes = [1, 2, 32, 8], strides = [1, 1, 1, 1]} : vector<4x2x32x8xf32> to vector<1x2x32x8xf32>
    %68 = vector.shape_cast %67 : vector<1x2x32x8xf32> to vector<2x32x8xf32>
    %69 = tpu.concatenate %62, %64, %66, %68 in 2 : vector<2x32x8xf32>, vector<2x32x8xf32>, vector<2x32x8xf32>, vector<2x32x8xf32> -> vector<2x32x32xf32>
    %70 = vector.shape_cast %69 : vector<2x32x32xf32> to vector<64x32xf32>
    %c0_11 = arith.constant 0 : index
    %c0_12 = arith.constant 0 : index
    %71 = vector.load %arg4[%c0_11, %c0_12] : memref<32x128xf32, #tpu.memory_space<vmem>>, vector<32x128xf32>
    %cst_13 = arith.constant dense<0.000000e+00> : vector<64x128xf32>
    %72 = tpu.matmul %70, %71, %cst_13 {dimension_numbers = #tpu.dot_dimension_numbers<[1], [0], [0], [1], [0, 0, 1, 1], [], []>} : vector<64x32xf32>, vector<32x128xf32>, vector<64x128xf32> -> vector<64x128xf32>
    %c0_14 = arith.constant 0 : index
    %c0_15 = arith.constant 0 : index
    %73 = vector.load %arg5[%c0_14, %c0_15] : memref<1x128xf32, #tpu.memory_space<vmem>>, vector<1x128xf32>
    %74 = vector.broadcast %73 : vector<1x128xf32> to vector<64x128xf32>
    %75 = arith.addf %72, %74 : vector<64x128xf32>
    %76 = vector.shape_cast %75 : vector<64x128xf32> to vector<2x32x128xf32>
    %c0_16 = arith.constant 0 : index
    %c0_17 = arith.constant 0 : index
    %c0_18 = arith.constant 0 : index
    %77 = vector.load %arg6[%c0_16, %c0_17, %c0_18] : memref<2x32x128xf32, #tpu.memory_space<vmem>>, vector<2x32x128xf32>
    tpu.vector_store %arg6[%c0_16, %c0_17, %c0_18], %76 {strides = array<i32>} : memref<2x32x128xf32, #tpu.memory_space<vmem>>, vector<2x32x128xf32>,
    return
  }
  func.func @transform_0(%arg0: i32) -> (i32, i32, i32) {
    %c0_i32 = arith.constant 0 : i32
    %c0_i32_0 = arith.constant 0 : i32
    %c0_i32_1 = arith.constant 0 : i32
    return %arg0, %c0_i32, %c0_i32_0 : i32, i32, i32
  }
  func.func @transform_1(%arg0: i32) -> (i32, i32) {
    %c0_i32 = arith.constant 0 : i32
    %c0_i32_0 = arith.constant 0 : i32
    %c0_i32_1 = arith.constant 0 : i32
    return %c0_i32, %c0_i32_0 : i32, i32
  }
  func.func @transform_2(%arg0: i32) -> (i32, i32) {
    %c0_i32 = arith.constant 0 : i32
    %c0_i32_0 = arith.constant 0 : i32
    %c0_i32_1 = arith.constant 0 : i32
    return %c0_i32, %c0_i32_0 : i32, i32
  }
  func.func @transform_3(%arg0: i32) -> (i32, i32) {
    %c0_i32 = arith.constant 0 : i32
    %c0_i32_0 = arith.constant 0 : i32
    %c0_i32_1 = arith.constant 0 : i32
    return %c0_i32, %c0_i32_0 : i32, i32
  }
  func.func @transform_4(%arg0: i32) -> (i32, i32) {
    %c0_i32 = arith.constant 0 : i32
    %c0_i32_0 = arith.constant 0 : i32
    %c0_i32_1 = arith.constant 0 : i32
    return %c0_i32, %c0_i32_0 : i32, i32
  }
  func.func @transform_5(%arg0: i32) -> (i32, i32, i32) {
    %c0_i32 = arith.constant 0 : i32
    %c0_i32_0 = arith.constant 0 : i32
    %c0_i32_1 = arith.constant 0 : i32
    return %arg0, %c0_i32, %c0_i32_0 : i32, i32, i32
  }
}

</mosaic_0001>

<llo_original>
// kernel: tpu_custom_call.1
$region0: #{tpu_custom_call.1}
  #allocation0 [shape = 'u32[]', space=smem, size = 0x4, offset = 0x4, fixed_abs, tag = 'smem constant byte address 0x4 - core index']
  #allocation1 [shape = 'u32[144,128]{1,0:T(1,128)}', space=vmem, size = 0x12000, scoped, tag = 'internal scratch']
  %s0 = inlined_call_operand.hbm [shape: f32[2,32,32], index: 0, kind: input, shape index: {}]
  %s1 = inlined_call_operand.hbm [shape: f32[32,96], index: 1, kind: input, shape index: {}]
  %s2 = inlined_call_operand.vmem [shape: f32[1,96], index: 2, kind: input, shape index: {}]
  %s3 = inlined_call_operand.hbm [shape: f32[32,128], index: 3, kind: input, shape index: {}]
  %s4 = inlined_call_operand.vmem [shape: f32[1,128], index: 4, kind: input, shape index: {}]
  %s5 = inlined_call_operand.hbm [shape: f32[2,32,128], index: 5, kind: output, shape index: {}]
  %s6 = sld [smem:[#allocation0]]
  $region42: #{tpu_custom_call.1} parent=0
    _
  %s8 = ssub.s32 1, %s6
  %s9 = scalar_select 0, %s8, %s6
  $region1: #{tpu_custom_call.1} parent=0
    #allocation2 [shape = 'u8[32768]{0}', space=vmem, size = 0x8000, scoped, tag = 'input window, operand 0, single buffered']
    #allocation3 [shape = 's32[1]{0}', space=sflag, size = 0x4, scoped, tag = 'scoped memory for tpu_custom_call.1']
    #allocation4 [shape = 's32[1]{0}', space=sflag, size = 0x4, scoped, tag = 'scoped memory for tpu_custom_call.1']
    #allocation5 [shape = 'u8[16384]{0}', space=vmem, size = 0x4000, scoped, tag = 'input window, operand 1, single buffered']
    #allocation6 [shape = 's32[1]{0}', space=sflag, size = 0x4, scoped, tag = 'scoped memory for tpu_custom_call.1']
    #allocation7 [shape = 'u8[16384]{0}', space=vmem, size = 0x4000, scoped, tag = 'input window, operand 3, single buffered']
    #allocation8 [shape = 'u8[32768]{0}', space=vmem, size = 0x8000, scoped, tag = 'output window, operand 0, single buffered']
    %10 = vsyncpa [#allocation3], 0
    %11 = vsyncpa [#allocation6], 0
    %12 = vsyncpa [#allocation4], 0
    // Predicated region
    $region2: #{tpu_custom_call.1} parent=1 // pred_check
      _
    $region3: #{tpu_custom_call.1} parent=1 // pred_check_branch
      %14 = sbr.rel (0) target = $region5
    $region4: #{tpu_custom_call.1} parent=1 // pred_region
      %s16 = ssub.s32 1024, 1024
      %17 = vsyncadd [#allocation3], %s16
      %s18 = sshll.u32 [#allocation2], 4
      %s19 = int_to_ptr.vmem [resolvable:$true] %s18
      %24 = dma.hbm_to_vmem [thread:$0]  %s0, 1024, %s19, [#allocation3], 128, 128, 8
    $region5: #{tpu_custom_call.1} parent=1 // pred_fallthru
      _
    // Predicated region
    $region6: #{tpu_custom_call.1} parent=1 // pred_check
      _
    $region7: #{tpu_custom_call.1} parent=1 // pred_check_branch
      %26 = sbr.rel (0) target = $region9
    $region8: #{tpu_custom_call.1} parent=1 // pred_region
      %s28 = ssub.s32 512, 512
      %29 = vsyncadd [#allocation6], %s28
      %s30 = sshll.u32 [#allocation5], 4
      %s31 = int_to_ptr.vmem [resolvable:$true] %s30
      %36 = dma.hbm_to_vmem [thread:$0]  %s1, 512, %s31, [#allocation6], 128, 128, 8
    $region9: #{tpu_custom_call.1} parent=1 // pred_fallthru
      _
    // Predicated region
    $region10: #{tpu_custom_call.1} parent=1 // pred_check
      _
    $region11: #{tpu_custom_call.1} parent=1 // pred_check_branch
      %38 = sbr.rel (0) target = $region13
    $region12: #{tpu_custom_call.1} parent=1 // pred_region
      _
    $region13: #{tpu_custom_call.1} parent=1 // pred_fallthru
      _
    // Predicated region
    $region14: #{tpu_custom_call.1} parent=1 // pred_check
      _
    $region15: #{tpu_custom_call.1} parent=1 // pred_check_branch
      %40 = sbr.rel (0) target = $region17
    $region16: #{tpu_custom_call.1} parent=1 // pred_region
      %s42 = ssub.s32 512, 512
      %43 = vsyncadd [#allocation6], %s42
      %s44 = sshll.u32 [#allocation7], 4
      %s45 = int_to_ptr.vmem [resolvable:$true] %s44
      %50 = dma.hbm_to_vmem [thread:$0]  %s3, 512, %s45, [#allocation6], 128, 128, 8
    $region17: #{tpu_custom_call.1} parent=1 // pred_fallthru
      _
    // Predicated region
    $region18: #{tpu_custom_call.1} parent=1 // pred_check
      _
    $region19: #{tpu_custom_call.1} parent=1 // pred_check_branch
      %52 = sbr.rel (0) target = $region21
    $region20: #{tpu_custom_call.1} parent=1 // pred_region
      _
    $region21: #{tpu_custom_call.1} parent=1 // pred_fallthru
      _
    // Predicated region
    $region22: #{tpu_custom_call.1} parent=1 // pred_check
      _
    $region23: #{tpu_custom_call.1} parent=1 // pred_check_branch
      %54 = sbr.rel (0) target = $region25
    $region24: #{tpu_custom_call.1} parent=1 // pred_region
      %55 = dma.done [#allocation3], 1024
    $region25: #{tpu_custom_call.1} parent=1 // pred_fallthru
      _
    // Predicated region
    $region26: #{tpu_custom_call.1} parent=1 // pred_check
      _
    $region27: #{tpu_custom_call.1} parent=1 // pred_check_branch
      %57 = sbr.rel (0) target = $region29
    $region28: #{tpu_custom_call.1} parent=1 // pred_region
      %58 = dma.done [#allocation6], 512
    $region29: #{tpu_custom_call.1} parent=1 // pred_fallthru
      _
    // Predicated region
    $region30: #{tpu_custom_call.1} parent=1 // pred_check
      _
    $region31: #{tpu_custom_call.1} parent=1 // pred_check_branch
      %60 = sbr.rel (0) target = $region33
    $region32: #{tpu_custom_call.1} parent=1 // pred_region
      %61 = dma.done [#allocation6], 512
    $region33: #{tpu_custom_call.1} parent=1 // pred_fallthru
      _
    %v62 = vld [vmem:[#allocation2] sm:$0xff]
    %v63 = vld [vmem:[#allocation2 + $0x8] sm:$0xff]
    %v64 = vld [vmem:[#allocation2 + $0x10] sm:$0xff]
    %v65 = vld [vmem:[#allocation2 + $0x18] sm:$0xff]
    %v66 = vld [vmem:[#allocation2 + $0x20] sm:$0xff]
    %v67 = vld [vmem:[#allocation2 + $0x28] sm:$0xff]
    %v68 = vld [vmem:[#allocation2 + $0x30] sm:$0xff]
    %v69 = vld [vmem:[#allocation2 + $0x38] sm:$0xff]
    %v70 = vld [vmem:[#allocation5] sm:$0xff]
    %v71 = vld [vmem:[#allocation5 + $0x8] sm:$0xff]
    %v72 = vld [vmem:[#allocation5 + $0x10] sm:$0xff]
    %v73 = vld [vmem:[#allocation5 + $0x18] sm:$0xff]
    %v74 = vld [vmem:[%s2] sm:$0x1]
    %v76 = vlaneseq
    %v77 = vshrl.u32 %v76, 7
    %v78 = vsub.s32 0, %v77
    %v79 = vrot.slane %v74, %v78
    %vm81 = vcmask 261120
    %v83 = vsel %vm81, %v62, 0
    %v86 = vsel %vm81, %v63, 0
    %v89 = vsel %vm81, %v64, 0
    %v92 = vsel %vm81, %v65, 0
    %v95 = vsel %vm81, %v66, 0
    %v98 = vsel %vm81, %v67, 0
    %v101 = vsel %vm81, %v68, 0
    %v104 = vsel %vm81, %v69, 0
    %106 = vmatprep.subr.mxu0 0.0
    %107 = vmatpush1.msra.mxu0 %v70
    %108 = vmatprep.subr.mxu0 0.0
    %109 = vmatpush1.msra.mxu0 %v71
    %110 = vmatprep.subr.mxu0 0.0
    %111 = vmatpush1.msra.mxu0 %v72
    %112 = vmatprep.subr.mxu0 0.0
    %113 = vmatpush1.msra.mxu0 %v73
    %114 = vmatprep.subr.mxu0 0.0
    %115 = vmatpush1.msra.mxu0 0.0
    %116 = vmatprep.subr.mxu0 0.0
    %117 = vmatpush1.msra.mxu0 0.0
    %118 = vmatprep.subr.mxu0 0.0
    %119 = vmatpush1.msra.mxu0 0.0
    %120 = vmatprep.subr.mxu0 0.0
    %121 = vmatpush1.msra.mxu0 0.0
    %122 = vmatprep.subr.mxu0 0.0
    %123 = vmatpush1.msra.mxu0 0.0
    %124 = vmatprep.subr.mxu0 0.0
    %125 = vmatpush1.msra.mxu0 0.0
    %126 = vmatprep.subr.mxu0 0.0
    %127 = vmatpush1.msra.mxu0 0.0
    %128 = vmatprep.subr.mxu0 0.0
    %129 = vmatpush1.msra.mxu0 0.0
    %130 = vmatprep.subr.mxu0 0.0
    %131 = vmatpush1.msra.mxu0 0.0
    %132 = vmatprep.subr.mxu0 0.0
    %133 = vmatpush1.msra.mxu0 0.0
    %134 = vmatprep.subr.mxu0 0.0
    %135 = vmatpush1.msra.mxu0 0.0
    %136 = vmatprep.subr.mxu0 0.0
    %137 = vmatpush1.msra.mxu0 0.0
    %138 = vmatprep.subr.mxu0 0.0
    %139 = vmatpush1.msra.mxu0 0.0
    %140 = vmatprep.subr.mxu0 0.0
    %141 = vmatpush1.msra.mxu0 0.0
    %142 = vmatprep.subr.mxu0 0.0
    %143 = vmatpush1.msra.mxu0 0.0
    %144 = vmatprep.subr.mxu0 0.0
    %145 = vmatpush1.msra.mxu0 0.0
    %146 = vmatprep.subr.mxu0 0.0
    %147 = vmatpush1.msra.mxu0 0.0
    %148 = vmatprep.subr.mxu0 0.0
    %149 = vmatpush1.msra.mxu0 0.0
    %150 = vmatprep.subr.mxu0 0.0
    %151 = vmatpush1.msra.mxu0 0.0
    %152 = vmatprep.subr.mxu0 0.0
    %153 = vmatpush1.msra.mxu0 0.0
    %154 = vmatprep.subr.mxu0 0.0
    %155 = vmatpush1.msra.mxu0 0.0
    %156 = vmatprep.subr.mxu0 0.0
    %157 = vmatpush1.msra.mxu0 0.0
    %158 = vmatprep.subr.mxu0 0.0
    %159 = vmatpush1.msra.mxu0 0.0
    %160 = vmatprep.subr.mxu0 0.0
    %161 = vmatpush1.msra.mxu0 0.0
    %162 = vmatprep.subr.mxu0 0.0
    %163 = vmatpush1.msra.mxu0 0.0
    %164 = vmatprep.subr.mxu0 0.0
    %165 = vmatpush1.msra.mxu0 0.0
    %166 = vmatprep.subr.mxu0 0.0
    %167 = vmatpush1.msra.mxu0 0.0
    %168 = vmatprep.subr.mxu0 0.0
    %169 = vmatpush1.msra.mxu0 0.0
    %170 = vmatprep.mubr.f32.mxu0 0.0
    %171 = vmatmul.mubr.f32.gmra.mrb[0].mxu0 %v83
    %v172 = vpop.f32.mrb[0].mxu0
    %v173 = vadd.f32 %v79, %v172
    %v174 = vpop.f32.mrb[0].mxu0
    %175 = vmatprep.mubr.f32.mxu0 0.0
    %176 = vmatmul.mubr.f32.gmra.mrb[0].mxu0 %v86
    %v177 = vpop.f32.mrb[0].mxu0
    %v178 = vadd.f32 %v79, %v177
    %v179 = vpop.f32.mrb[0].mxu0
    %180 = vmatprep.mubr.f32.mxu0 0.0
    %181 = vmatmul.mubr.f32.gmra.mrb[0].mxu0 %v89
    %v182 = vpop.f32.mrb[0].mxu0
    %v183 = vadd.f32 %v79, %v182
    %v184 = vpop.f32.mrb[0].mxu0
    %185 = vmatprep.mubr.f32.mxu0 0.0
    %186 = vmatmul.mubr.f32.gmra.mrb[0].mxu0 %v92
    %v187 = vpop.f32.mrb[0].mxu0
    %v188 = vadd.f32 %v79, %v187
    %v189 = vpop.f32.mrb[0].mxu0
    %190 = vmatprep.mubr.f32.mxu0 0.0
    %191 = vmatmul.mubr.f32.gmra.mrb[0].mxu0 %v95
    %v192 = vpop.f32.mrb[0].mxu0
    %v193 = vadd.f32 %v79, %v192
    %v194 = vpop.f32.mrb[0].mxu0
    %195 = vmatprep.mubr.f32.mxu0 0.0
    %196 = vmatmul.mubr.f32.gmra.mrb[0].mxu0 %v98
    %v197 = vpop.f32.mrb[0].mxu0
    %v198 = vadd.f32 %v79, %v197
    %v199 = vpop.f32.mrb[0].mxu0
    %200 = vmatprep.mubr.f32.mxu0 0.0
    %201 = vmatmul.mubr.f32.gmra.mrb[0].mxu0 %v101
    %v202 = vpop.f32.mrb[0].mxu0
    %v203 = vadd.f32 %v79, %v202
    %v204 = vpop.f32.mrb[0].mxu0
    %205 = vmatprep.mubr.f32.mxu0 0.0
    %206 = vmatmul.mubr.f32.gmra.mrb[0].mxu0 %v104
    %v207 = vpop.f32.mrb[0].mxu0
    %v208 = vadd.f32 %v79, %v207
    %v209 = vpop.f32.mrb[0].mxu0
    %210 = vdwg.mxu0
    %219 = vrot.lane.b32.xlu0 %v173, 120
    %v220 = vpop.permute.xlu0 %219
    %221 = vrot.lane.b32.xlu0 %v178, 120
    %v222 = vpop.permute.xlu0 %221
    %223 = vrot.lane.b32.xlu0 %v183, 120
    %v224 = vpop.permute.xlu0 %223
    %225 = vrot.lane.b32.xlu0 %v188, 120
    %v226 = vpop.permute.xlu0 %225
    %227 = vrot.lane.b32.xlu0 %v193, 120
    %v228 = vpop.permute.xlu0 %227
    %229 = vrot.lane.b32.xlu0 %v198, 120
    %v230 = vpop.permute.xlu0 %229
    %231 = vrot.lane.b32.xlu0 %v203, 120
    %v232 = vpop.permute.xlu0 %231
    %233 = vrot.lane.b32.xlu0 %v208, 120
    %v234 = vpop.permute.xlu0 %233
    %235 = vrot.lane.b32.xlu0 %v173, 112
    %v236 = vpop.permute.xlu0 %235
    %237 = vrot.lane.b32.xlu0 %v178, 112
    %v238 = vpop.permute.xlu0 %237
    %239 = vrot.lane.b32.xlu0 %v183, 112
    %v240 = vpop.permute.xlu0 %239
    %241 = vrot.lane.b32.xlu0 %v188, 112
    %v242 = vpop.permute.xlu0 %241
    %243 = vrot.lane.b32.xlu0 %v193, 112
    %v244 = vpop.permute.xlu0 %243
    %245 = vrot.lane.b32.xlu0 %v198, 112
    %v246 = vpop.permute.xlu0 %245
    %247 = vrot.lane.b32.xlu0 %v203, 112
    %v248 = vpop.permute.xlu0 %247
    %249 = vrot.lane.b32.xlu0 %v208, 112
    %v250 = vpop.permute.xlu0 %249
    %251 = vrot.lane.b32.xlu0 %v173, 104
    %v252 = vpop.permute.xlu0 %251
    %253 = vrot.lane.b32.xlu0 %v178, 104
    %v254 = vpop.permute.xlu0 %253
    %255 = vrot.lane.b32.xlu0 %v183, 104
    %v256 = vpop.permute.xlu0 %255
    %257 = vrot.lane.b32.xlu0 %v188, 104
    %v258 = vpop.permute.xlu0 %257
    %259 = vrot.lane.b32.xlu0 %v193, 104
    %v260 = vpop.permute.xlu0 %259
    %261 = vrot.lane.b32.xlu0 %v198, 104
    %v262 = vpop.permute.xlu0 %261
    %263 = vrot.lane.b32.xlu0 %v203, 104
    %v264 = vpop.permute.xlu0 %263
    %265 = vrot.lane.b32.xlu0 %v208, 104
    %v266 = vpop.permute.xlu0 %265
    %267 = vrot.lane.b32.xlu0 %v173, 96
    %v268 = vpop.permute.xlu0 %267
    %269 = vrot.lane.b32.xlu0 %v178, 96
    %v270 = vpop.permute.xlu0 %269
    %271 = vrot.lane.b32.xlu0 %v183, 96
    %v272 = vpop.permute.xlu0 %271
    %273 = vrot.lane.b32.xlu0 %v188, 96
    %v274 = vpop.permute.xlu0 %273
    %vm275 = vcmask 64512
    %v276 = vsel %vm275, %v173, 0
    %v278 = vsel %vm275, %v178, 0
    %v280 = vsel %vm275, %v183, 0
    %v282 = vsel %vm275, %v188, 0
    %v284 = vsel %vm275, %v268, 0
    %v286 = vsel %vm275, %v270, 0
    %v288 = vsel %vm275, %v272, 0
    %v290 = vsel %vm275, %v274, 0
    %292 = vmatprep.subr.mxu0 0.0
    %293 = vmatpush1.xpose.msra.mxu0 %v284
    %294 = vmatprep.subr.mxu0 0.0
    %295 = vmatpush1.xpose.msra.mxu0 %v286
    %296 = vmatprep.subr.mxu0 0.0
    %297 = vmatpush1.xpose.msra.mxu0 %v288
    %298 = vmatprep.subr.mxu0 0.0
    %299 = vmatpush1.xpose.msra.mxu0 %v290
    %300 = vmatprep.subr.mxu0 0.0
    %301 = vmatpush1.xpose.msra.mxu0 0.0
    %302 = vmatprep.subr.mxu0 0.0
    %303 = vmatpush1.xpose.msra.mxu0 0.0
    %304 = vmatprep.subr.mxu0 0.0
    %305 = vmatpush1.xpose.msra.mxu0 0.0
    %306 = vmatprep.subr.mxu0 0.0
    %307 = vmatpush1.xpose.msra.mxu0 0.0
    %308 = vmatprep.subr.mxu0 0.0
    %309 = vmatpush1.xpose.msra.mxu0 0.0
    %310 = vmatprep.subr.mxu0 0.0
    %311 = vmatpush1.xpose.msra.mxu0 0.0
    %312 = vmatprep.subr.mxu0 0.0
    %313 = vmatpush1.xpose.msra.mxu0 0.0
    %314 = vmatprep.subr.mxu0 0.0
    %315 = vmatpush1.xpose.msra.mxu0 0.0
    %316 = vmatprep.subr.mxu0 0.0
    %317 = vmatpush1.xpose.msra.mxu0 0.0
    %318 = vmatprep.subr.mxu0 0.0
    %319 = vmatpush1.xpose.msra.mxu0 0.0
    %320 = vmatprep.subr.mxu0 0.0
    %321 = vmatpush1.xpose.msra.mxu0 0.0
    %322 = vmatprep.subr.mxu0 0.0
    %323 = vmatpush1.xpose.msra.mxu0 0.0
    %324 = vmatprep.subr.mxu0 0.0
    %325 = vmatpush1.xpose.msra.mxu0 0.0
    %326 = vmatprep.subr.mxu0 0.0
    %327 = vmatpush1.xpose.msra.mxu0 0.0
    %328 = vmatprep.subr.mxu0 0.0
    %329 = vmatpush1.xpose.msra.mxu0 0.0
    %330 = vmatprep.subr.mxu0 0.0
    %331 = vmatpush1.xpose.msra.mxu0 0.0
    %332 = vmatprep.subr.mxu0 0.0
    %333 = vmatpush1.xpose.msra.mxu0 0.0
    %334 = vmatprep.subr.mxu0 0.0
    %335 = vmatpush1.xpose.msra.mxu0 0.0
    %336 = vmatprep.subr.mxu0 0.0
    %337 = vmatpush1.xpose.msra.mxu0 0.0
    %338 = vmatprep.subr.mxu0 0.0
    %339 = vmatpush1.xpose.msra.mxu0 0.0
    %340 = vmatprep.subr.mxu0 0.0
    %341 = vmatpush1.xpose.msra.mxu0 0.0
    %342 = vmatprep.subr.mxu0 0.0
    %343 = vmatpush1.xpose.msra.mxu0 0.0
    %344 = vmatprep.subr.mxu0 0.0
    %345 = vmatpush1.xpose.msra.mxu0 0.0
    %346 = vmatprep.subr.mxu0 0.0
    %347 = vmatpush1.xpose.msra.mxu0 0.0
    %348 = vmatprep.subr.mxu0 0.0
    %349 = vmatpush1.xpose.msra.mxu0 0.0
    %350 = vmatprep.subr.mxu0 0.0
    %351 = vmatpush1.xpose.msra.mxu0 0.0
    %352 = vmatprep.subr.mxu0 0.0
    %353 = vmatpush1.xpose.msra.mxu0 0.0
    %354 = vmatprep.subr.mxu0 0.0
    %355 = vmatpush1.xpose.msra.mxu0 0.0
    %356 = vmatprep.mubr.f32.mxu0 0.0
    %357 = vmatmul.mubr.f32.gmra.mrb[0].mxu0 %v276
    %v358 = vpop.f32.mrb[0].mxu0
    %v359 = vadd.f32 0.0, %v358
    %v360 = vpop.f32.mrb[0].mxu0
    %361 = vmatprep.mubr.f32.mxu0 0.0
    %362 = vmatmul.mubr.f32.gmra.mrb[0].mxu0 %v278
    %v363 = vpop.f32.mrb[0].mxu0
    %v364 = vadd.f32 0.0, %v363
    %v365 = vpop.f32.mrb[0].mxu0
    %366 = vmatprep.mubr.f32.mxu0 0.0
    %367 = vmatmul.mubr.f32.gmra.mrb[0].mxu0 %v280
    %v368 = vpop.f32.mrb[0].mxu0
    %v369 = vadd.f32 0.0, %v368
    %v370 = vpop.f32.mrb[0].mxu0
    %371 = vmatprep.mubr.f32.mxu0 0.0
    %372 = vmatmul.mubr.f32.gmra.mrb[0].mxu0 %v282
    %v373 = vpop.f32.mrb[0].mxu0
    %v374 = vadd.f32 0.0, %v373
    %v375 = vpop.f32.mrb[0].mxu0
    %376 = vdwg.mxu0
    %377 = vrot.lane.b32.xlu0 %v193, 96
    %v378 = vpop.permute.xlu0 %377
    %379 = vrot.lane.b32.xlu0 %v198, 96
    %v380 = vpop.permute.xlu0 %379
    %381 = vrot.lane.b32.xlu0 %v203, 96
    %v382 = vpop.permute.xlu0 %381
    %383 = vrot.lane.b32.xlu0 %v208, 96
    %v384 = vpop.permute.xlu0 %383
    %v385 = vsel %vm275, %v193, 0
    %v387 = vsel %vm275, %v198, 0
    %v389 = vsel %vm275, %v203, 0
    %v391 = vsel %vm275, %v208, 0
    %v393 = vsel %vm275, %v378, 0
    %v395 = vsel %vm275, %v380, 0
    %v397 = vsel %vm275, %v382, 0
    %v399 = vsel %vm275, %v384, 0
    %401 = vmatprep.subr.mxu0 0.0
    %402 = vmatpush1.xpose.msra.mxu0 %v393
    %403 = vmatprep.subr.mxu0 0.0
    %404 = vmatpush1.xpose.msra.mxu0 %v395
    %405 = vmatprep.subr.mxu0 0.0
    %406 = vmatpush1.xpose.msra.mxu0 %v397
    %407 = vmatprep.subr.mxu0 0.0
    %408 = vmatpush1.xpose.msra.mxu0 %v399
    %409 = vmatprep.subr.mxu0 0.0
    %410 = vmatpush1.xpose.msra.mxu0 0.0
    %411 = vmatprep.subr.mxu0 0.0
    %412 = vmatpush1.xpose.msra.mxu0 0.0
    %413 = vmatprep.subr.mxu0 0.0
    %414 = vmatpush1.xpose.msra.mxu0 0.0
    %415 = vmatprep.subr.mxu0 0.0
    %416 = vmatpush1.xpose.msra.mxu0 0.0
    %417 = vmatprep.subr.mxu0 0.0
    %418 = vmatpush1.xpose.msra.mxu0 0.0
    %419 = vmatprep.subr.mxu0 0.0
    %420 = vmatpush1.xpose.msra.mxu0 0.0
    %421 = vmatprep.subr.mxu0 0.0
    %422 = vmatpush1.xpose.msra.mxu0 0.0
    %423 = vmatprep.subr.mxu0 0.0
    %424 = vmatpush1.xpose.msra.mxu0 0.0
    %425 = vmatprep.subr.mxu0 0.0
    %426 = vmatpush1.xpose.msra.mxu0 0.0
    %427 = vmatprep.subr.mxu0 0.0
    %428 = vmatpush1.xpose.msra.mxu0 0.0
    %429 = vmatprep.subr.mxu0 0.0
    %430 = vmatpush1.xpose.msra.mxu0 0.0
    %431 = vmatprep.subr.mxu0 0.0
    %432 = vmatpush1.xpose.msra.mxu0 0.0
    %433 = vmatprep.subr.mxu0 0.0
    %434 = vmatpush1.xpose.msra.mxu0 0.0
    %435 = vmatprep.subr.mxu0 0.0
    %436 = vmatpush1.xpose.msra.mxu0 0.0
    %437 = vmatprep.subr.mxu0 0.0
    %438 = vmatpush1.xpose.msra.mxu0 0.0
    %439 = vmatprep.subr.mxu0 0.0
    %440 = vmatpush1.xpose.msra.mxu0 0.0
    %441 = vmatprep.subr.mxu0 0.0
    %442 = vmatpush1.xpose.msra.mxu0 0.0
    %443 = vmatprep.subr.mxu0 0.0
    %444 = vmatpush1.xpose.msra.mxu0 0.0
    %445 = vmatprep.subr.mxu0 0.0
    %446 = vmatpush1.xpose.msra.mxu0 0.0
    %447 = vmatprep.subr.mxu0 0.0
    %448 = vmatpush1.xpose.msra.mxu0 0.0
    %449 = vmatprep.subr.mxu0 0.0
    %450 = vmatpush1.xpose.msra.mxu0 0.0
    %451 = vmatprep.subr.mxu0 0.0
    %452 = vmatpush1.xpose.msra.mxu0 0.0
    %453 = vmatprep.subr.mxu0 0.0
    %454 = vmatpush1.xpose.msra.mxu0 0.0
    %455 = vmatprep.subr.mxu0 0.0
    %456 = vmatpush1.xpose.msra.mxu0 0.0
    %457 = vmatprep.subr.mxu0 0.0
    %458 = vmatpush1.xpose.msra.mxu0 0.0
    %459 = vmatprep.subr.mxu0 0.0
    %460 = vmatpush1.xpose.msra.mxu0 0.0
    %461 = vmatprep.subr.mxu0 0.0
    %462 = vmatpush1.xpose.msra.mxu0 0.0
    %463 = vmatprep.subr.mxu0 0.0
    %464 = vmatpush1.xpose.msra.mxu0 0.0
    %465 = vmatprep.mubr.f32.mxu0 0.0
    %466 = vmatmul.mubr.f32.gmra.mrb[0].mxu0 %v385
    %v467 = vpop.f32.mrb[0].mxu0
    %v468 = vadd.f32 0.0, %v467
    %v469 = vpop.f32.mrb[0].mxu0
    %470 = vmatprep.mubr.f32.mxu0 0.0
    %471 = vmatmul.mubr.f32.gmra.mrb[0].mxu0 %v387
    %v472 = vpop.f32.mrb[0].mxu0
    %v473 = vadd.f32 0.0, %v472
    %v474 = vpop.f32.mrb[0].mxu0
    %475 = vmatprep.mubr.f32.mxu0 0.0
    %476 = vmatmul.mubr.f32.gmra.mrb[0].mxu0 %v389
    %v477 = vpop.f32.mrb[0].mxu0
    %v478 = vadd.f32 0.0, %v477
    %v479 = vpop.f32.mrb[0].mxu0
    %480 = vmatprep.mubr.f32.mxu0 0.0
    %481 = vmatmul.mubr.f32.gmra.mrb[0].mxu0 %v391
    %v482 = vpop.f32.mrb[0].mxu0
    %v483 = vadd.f32 0.0, %v482
    %v484 = vpop.f32.mrb[0].mxu0
    %485 = vdwg.mxu0
    %486 = vrot.lane.b32.xlu0 %v220, 96
    %v487 = vpop.permute.xlu0 %486
    %488 = vrot.lane.b32.xlu0 %v222, 96
    %v489 = vpop.permute.xlu0 %488
    %490 = vrot.lane.b32.xlu0 %v224, 96
    %v491 = vpop.permute.xlu0 %490
    %492 = vrot.lane.b32.xlu0 %v226, 96
    %v493 = vpop.permute.xlu0 %492
    %v494 = vsel %vm275, %v220, 0
    %v496 = vsel %vm275, %v222, 0
    %v498 = vsel %vm275, %v224, 0
    %v500 = vsel %vm275, %v226, 0
    %v502 = vsel %vm275, %v487, 0
    %v504 = vsel %vm275, %v489, 0
    %v506 = vsel %vm275, %v491, 0
    %v508 = vsel %vm275, %v493, 0
    %510 = vmatprep.subr.mxu0 0.0
    %511 = vmatpush1.xpose.msra.mxu0 %v502
    %512 = vmatprep.subr.mxu0 0.0
    %513 = vmatpush1.xpose.msra.mxu0 %v504
    %514 = vmatprep.subr.mxu0 0.0
    %515 = vmatpush1.xpose.msra.mxu0 %v506
    %516 = vmatprep.subr.mxu0 0.0
    %517 = vmatpush1.xpose.msra.mxu0 %v508
    %518 = vmatprep.subr.mxu0 0.0
    %519 = vmatpush1.xpose.msra.mxu0 0.0
    %520 = vmatprep.subr.mxu0 0.0
    %521 = vmatpush1.xpose.msra.mxu0 0.0
    %522 = vmatprep.subr.mxu0 0.0
    %523 = vmatpush1.xpose.msra.mxu0 0.0
    %524 = vmatprep.subr.mxu0 0.0
    %525 = vmatpush1.xpose.msra.mxu0 0.0
    %526 = vmatprep.subr.mxu0 0.0
    %527 = vmatpush1.xpose.msra.mxu0 0.0
    %528 = vmatprep.subr.mxu0 0.0
    %529 = vmatpush1.xpose.msra.mxu0 0.0
    %530 = vmatprep.subr.mxu0 0.0
    %531 = vmatpush1.xpose.msra.mxu0 0.0
    %532 = vmatprep.subr.mxu0 0.0
    %533 = vmatpush1.xpose.msra.mxu0 0.0
    %534 = vmatprep.subr.mxu0 0.0
    %535 = vmatpush1.xpose.msra.mxu0 0.0
    %536 = vmatprep.subr.mxu0 0.0
    %537 = vmatpush1.xpose.msra.mxu0 0.0
    %538 = vmatprep.subr.mxu0 0.0
    %539 = vmatpush1.xpose.msra.mxu0 0.0
    %540 = vmatprep.subr.mxu0 0.0
    %541 = vmatpush1.xpose.msra.mxu0 0.0
    %542 = vmatprep.subr.mxu0 0.0
    %543 = vmatpush1.xpose.msra.mxu0 0.0
    %544 = vmatprep.subr.mxu0 0.0
    %545 = vmatpush1.xpose.msra.mxu0 0.0
    %546 = vmatprep.subr.mxu0 0.0
    %547 = vmatpush1.xpose.msra.mxu0 0.0
    %548 = vmatprep.subr.mxu0 0.0
    %549 = vmatpush1.xpose.msra.mxu0 0.0
    %550 = vmatprep.subr.mxu0 0.0
    %551 = vmatpush1.xpose.msra.mxu0 0.0
    %552 = vmatprep.subr.mxu0 0.0
    %553 = vmatpush1.xpose.msra.mxu0 0.0
    %554 = vmatprep.subr.mxu0 0.0
    %555 = vmatpush1.xpose.msra.mxu0 0.0
    %556 = vmatprep.subr.mxu0 0.0
    %557 = vmatpush1.xpose.msra.mxu0 0.0
    %558 = vmatprep.subr.mxu0 0.0
    %559 = vmatpush1.xpose.msra.mxu0 0.0
    %560 = vmatprep.subr.mxu0 0.0
    %561 = vmatpush1.xpose.msra.mxu0 0.0
    %562 = vmatprep.subr.mxu0 0.0
    %563 = vmatpush1.xpose.msra.mxu0 0.0
    %564 = vmatprep.subr.mxu0 0.0
    %565 = vmatpush1.xpose.msra.mxu0 0.0
    %566 = vmatprep.subr.mxu0 0.0
    %567 = vmatpush1.xpose.msra.mxu0 0.0
    %568 = vmatprep.subr.mxu0 0.0
    %569 = vmatpush1.xpose.msra.mxu0 0.0
    %570 = vmatprep.subr.mxu0 0.0
    %571 = vmatpush1.xpose.msra.mxu0 0.0
    %572 = vmatprep.subr.mxu0 0.0
    %573 = vmatpush1.xpose.msra.mxu0 0.0
    %574 = vmatprep.mubr.f32.mxu0 0.0
    %575 = vmatmul.mubr.f32.gmra.mrb[0].mxu0 %v494
    %v576 = vpop.f32.mrb[0].mxu0
    %v577 = vadd.f32 0.0, %v576
    %v578 = vpop.f32.mrb[0].mxu0
    %579 = vmatprep.mubr.f32.mxu0 0.0
    %580 = vmatmul.mubr.f32.gmra.mrb[0].mxu0 %v496
    %v581 = vpop.f32.mrb[0].mxu0
    %v582 = vadd.f32 0.0, %v581
    %v583 = vpop.f32.mrb[0].mxu0
    %584 = vmatprep.mubr.f32.mxu0 0.0
    %585 = vmatmul.mubr.f32.gmra.mrb[0].mxu0 %v498
    %v586 = vpop.f32.mrb[0].mxu0
    %v587 = vadd.f32 0.0, %v586
    %v588 = vpop.f32.mrb[0].mxu0
    %589 = vmatprep.mubr.f32.mxu0 0.0
    %590 = vmatmul.mubr.f32.gmra.mrb[0].mxu0 %v500
    %v591 = vpop.f32.mrb[0].mxu0
    %v592 = vadd.f32 0.0, %v591
    %v593 = vpop.f32.mrb[0].mxu0
    %594 = vdwg.mxu0
    %595 = vrot.lane.b32.xlu0 %v228, 96
    %v596 = vpop.permute.xlu0 %595
    %597 = vrot.lane.b32.xlu0 %v230, 96
    %v598 = vpop.permute.xlu0 %597
    %599 = vrot.lane.b32.xlu0 %v232, 96
    %v600 = vpop.permute.xlu0 %599
    %601 = vrot.lane.b32.xlu0 %v234, 96
    %v602 = vpop.permute.xlu0 %601
    %v603 = vsel %vm275, %v228, 0
    %v605 = vsel %vm275, %v230, 0
    %v607 = vsel %vm275, %v232, 0
    %v609 = vsel %vm275, %v234, 0
    %v611 = vsel %vm275, %v596, 0
    %v613 = vsel %vm275, %v598, 0
    %v615 = vsel %vm275, %v600, 0
    %v617 = vsel %vm275, %v602, 0
    %619 = vmatprep.subr.mxu0 0.0
    %620 = vmatpush1.xpose.msra.mxu0 %v611
    %621 = vmatprep.subr.mxu0 0.0
    %622 = vmatpush1.xpose.msra.mxu0 %v613
    %623 = vmatprep.subr.mxu0 0.0
    %624 = vmatpush1.xpose.msra.mxu0 %v615
    %625 = vmatprep.subr.mxu0 0.0
    %626 = vmatpush1.xpose.msra.mxu0 %v617
    %627 = vmatprep.subr.mxu0 0.0
    %628 = vmatpush1.xpose.msra.mxu0 0.0
    %629 = vmatprep.subr.mxu0 0.0
    %630 = vmatpush1.xpose.msra.mxu0 0.0
    %631 = vmatprep.subr.mxu0 0.0
    %632 = vmatpush1.xpose.msra.mxu0 0.0
    %633 = vmatprep.subr.mxu0 0.0
    %634 = vmatpush1.xpose.msra.mxu0 0.0
    %635 = vmatprep.subr.mxu0 0.0
    %636 = vmatpush1.xpose.msra.mxu0 0.0
    %637 = vmatprep.subr.mxu0 0.0
    %638 = vmatpush1.xpose.msra.mxu0 0.0
    %639 = vmatprep.subr.mxu0 0.0
    %640 = vmatpush1.xpose.msra.mxu0 0.0
    %641 = vmatprep.subr.mxu0 0.0
    %642 = vmatpush1.xpose.msra.mxu0 0.0
    %643 = vmatprep.subr.mxu0 0.0
    %644 = vmatpush1.xpose.msra.mxu0 0.0
    %645 = vmatprep.subr.mxu0 0.0
    %646 = vmatpush1.xpose.msra.mxu0 0.0
    %647 = vmatprep.subr.mxu0 0.0
    %648 = vmatpush1.xpose.msra.mxu0 0.0
    %649 = vmatprep.subr.mxu0 0.0
    %650 = vmatpush1.xpose.msra.mxu0 0.0
    %651 = vmatprep.subr.mxu0 0.0
    %652 = vmatpush1.xpose.msra.mxu0 0.0
    %653 = vmatprep.subr.mxu0 0.0
    %654 = vmatpush1.xpose.msra.mxu0 0.0
    %655 = vmatprep.subr.mxu0 0.0
    %656 = vmatpush1.xpose.msra.mxu0 0.0
    %657 = vmatprep.subr.mxu0 0.0
    %658 = vmatpush1.xpose.msra.mxu0 0.0
    %659 = vmatprep.subr.mxu0 0.0
    %660 = vmatpush1.xpose.msra.mxu0 0.0
    %661 = vmatprep.subr.mxu0 0.0
    %662 = vmatpush1.xpose.msra.mxu0 0.0
    %663 = vmatprep.subr.mxu0 0.0
    %664 = vmatpush1.xpose.msra.mxu0 0.0
    %665 = vmatprep.subr.mxu0 0.0
    %666 = vmatpush1.xpose.msra.mxu0 0.0
    %667 = vmatprep.subr.mxu0 0.0
    %668 = vmatpush1.xpose.msra.mxu0 0.0
    %669 = vmatprep.subr.mxu0 0.0
    %670 = vmatpush1.xpose.msra.mxu0 0.0
    %671 = vmatprep.subr.mxu0 0.0
    %672 = vmatpush1.xpose.msra.mxu0 0.0
    %673 = vmatprep.subr.mxu0 0.0
    %674 = vmatpush1.xpose.msra.mxu0 0.0
    %675 = vmatprep.subr.mxu0 0.0
    %676 = vmatpush1.xpose.msra.mxu0 0.0
    %677 = vmatprep.subr.mxu0 0.0
    %678 = vmatpush1.xpose.msra.mxu0 0.0
    %679 = vmatprep.subr.mxu0 0.0
    %680 = vmatpush1.xpose.msra.mxu0 0.0
    %681 = vmatprep.subr.mxu0 0.0
    %682 = vmatpush1.xpose.msra.mxu0 0.0
    %683 = vmatprep.mubr.f32.mxu0 0.0
    %684 = vmatmul.mubr.f32.gmra.mrb[0].mxu0 %v603
    %v685 = vpop.f32.mrb[0].mxu0
    %v686 = vadd.f32 0.0, %v685
    %v687 = vpop.f32.mrb[0].mxu0
    %688 = vmatprep.mubr.f32.mxu0 0.0
    %689 = vmatmul.mubr.f32.gmra.mrb[0].mxu0 %v605
    %v690 = vpop.f32.mrb[0].mxu0
    %v691 = vadd.f32 0.0, %v690
    %v692 = vpop.f32.mrb[0].mxu0
    %693 = vmatprep.mubr.f32.mxu0 0.0
    %694 = vmatmul.mubr.f32.gmra.mrb[0].mxu0 %v607
    %v695 = vpop.f32.mrb[0].mxu0
    %v696 = vadd.f32 0.0, %v695
    %v697 = vpop.f32.mrb[0].mxu0
    %698 = vmatprep.mubr.f32.mxu0 0.0
    %699 = vmatmul.mubr.f32.gmra.mrb[0].mxu0 %v609
    %v700 = vpop.f32.mrb[0].mxu0
    %v701 = vadd.f32 0.0, %v700
    %v702 = vpop.f32.mrb[0].mxu0
    %703 = vdwg.mxu0
    %704 = vrot.lane.b32.xlu0 %v236, 96
    %v705 = vpop.permute.xlu0 %704
    %706 = vrot.lane.b32.xlu0 %v238, 96
    %v707 = vpop.permute.xlu0 %706
    %708 = vrot.lane.b32.xlu0 %v240, 96
    %v709 = vpop.permute.xlu0 %708
    %710 = vrot.lane.b32.xlu0 %v242, 96
    %v711 = vpop.permute.xlu0 %710
    %v712 = vsel %vm275, %v236, 0
    %v714 = vsel %vm275, %v238, 0
    %v716 = vsel %vm275, %v240, 0
    %v718 = vsel %vm275, %v242, 0
    %v720 = vsel %vm275, %v705, 0
    %v722 = vsel %vm275, %v707, 0
    %v724 = vsel %vm275, %v709, 0
    %v726 = vsel %vm275, %v711, 0
    %728 = vmatprep.subr.mxu0 0.0
    %729 = vmatpush1.xpose.msra.mxu0 %v720
    %730 = vmatprep.subr.mxu0 0.0
    %731 = vmatpush1.xpose.msra.mxu0 %v722
    %732 = vmatprep.subr.mxu0 0.0
    %733 = vmatpush1.xpose.msra.mxu0 %v724
    %734 = vmatprep.subr.mxu0 0.0
    %735 = vmatpush1.xpose.msra.mxu0 %v726
    %736 = vmatprep.subr.mxu0 0.0
    %737 = vmatpush1.xpose.msra.mxu0 0.0
    %738 = vmatprep.subr.mxu0 0.0
    %739 = vmatpush1.xpose.msra.mxu0 0.0
    %740 = vmatprep.subr.mxu0 0.0
    %741 = vmatpush1.xpose.msra.mxu0 0.0
    %742 = vmatprep.subr.mxu0 0.0
    %743 = vmatpush1.xpose.msra.mxu0 0.0
    %744 = vmatprep.subr.mxu0 0.0
    %745 = vmatpush1.xpose.msra.mxu0 0.0
    %746 = vmatprep.subr.mxu0 0.0
    %747 = vmatpush1.xpose.msra.mxu0 0.0
    %748 = vmatprep.subr.mxu0 0.0
    %749 = vmatpush1.xpose.msra.mxu0 0.0
    %750 = vmatprep.subr.mxu0 0.0
    %751 = vmatpush1.xpose.msra.mxu0 0.0
    %752 = vmatprep.subr.mxu0 0.0
    %753 = vmatpush1.xpose.msra.mxu0 0.0
    %754 = vmatprep.subr.mxu0 0.0
    %755 = vmatpush1.xpose.msra.mxu0 0.0
    %756 = vmatprep.subr.mxu0 0.0
    %757 = vmatpush1.xpose.msra.mxu0 0.0
    %758 = vmatprep.subr.mxu0 0.0
    %759 = vmatpush1.xpose.msra.mxu0 0.0
    %760 = vmatprep.subr.mxu0 0.0
    %761 = vmatpush1.xpose.msra.mxu0 0.0
    %762 = vmatprep.subr.mxu0 0.0
    %763 = vmatpush1.xpose.msra.mxu0 0.0
    %764 = vmatprep.subr.mxu0 0.0
    %765 = vmatpush1.xpose.msra.mxu0 0.0
    %766 = vmatprep.subr.mxu0 0.0
    %767 = vmatpush1.xpose.msra.mxu0 0.0
    %768 = vmatprep.subr.mxu0 0.0
    %769 = vmatpush1.xpose.msra.mxu0 0.0
    %770 = vmatprep.subr.mxu0 0.0
    %771 = vmatpush1.xpose.msra.mxu0 0.0
    %772 = vmatprep.subr.mxu0 0.0
    %773 = vmatpush1.xpose.msra.mxu0 0.0
    %774 = vmatprep.subr.mxu0 0.0
    %775 = vmatpush1.xpose.msra.mxu0 0.0
    %776 = vmatprep.subr.mxu0 0.0
    %777 = vmatpush1.xpose.msra.mxu0 0.0
    %778 = vmatprep.subr.mxu0 0.0
    %779 = vmatpush1.xpose.msra.mxu0 0.0
    %780 = vmatprep.subr.mxu0 0.0
    %781 = vmatpush1.xpose.msra.mxu0 0.0
    %782 = vmatprep.subr.mxu0 0.0
    %783 = vmatpush1.xpose.msra.mxu0 0.0
    %784 = vmatprep.subr.mxu0 0.0
    %785 = vmatpush1.xpose.msra.mxu0 0.0
    %786 = vmatprep.subr.mxu0 0.0
    %787 = vmatpush1.xpose.msra.mxu0 0.0
    %788 = vmatprep.subr.mxu0 0.0
    %789 = vmatpush1.xpose.msra.mxu0 0.0
    %790 = vmatprep.subr.mxu0 0.0
    %791 = vmatpush1.xpose.msra.mxu0 0.0
    %792 = vmatprep.mubr.f32.mxu0 0.0
    %793 = vmatmul.mubr.f32.gmra.mrb[0].mxu0 %v712
    %v794 = vpop.f32.mrb[0].mxu0
    %v795 = vadd.f32 0.0, %v794
    %v796 = vpop.f32.mrb[0].mxu0
    %797 = vmatprep.mubr.f32.mxu0 0.0
    %798 = vmatmul.mubr.f32.gmra.mrb[0].mxu0 %v714
    %v799 = vpop.f32.mrb[0].mxu0
    %v800 = vadd.f32 0.0, %v799
    %v801 = vpop.f32.mrb[0].mxu0
    %802 = vmatprep.mubr.f32.mxu0 0.0
    %803 = vmatmul.mubr.f32.gmra.mrb[0].mxu0 %v716
    %v804 = vpop.f32.mrb[0].mxu0
    %v805 = vadd.f32 0.0, %v804
    %v806 = vpop.f32.mrb[0].mxu0
    %807 = vmatprep.mubr.f32.mxu0 0.0
    %808 = vmatmul.mubr.f32.gmra.mrb[0].mxu0 %v718
    %v809 = vpop.f32.mrb[0].mxu0
    %v810 = vadd.f32 0.0, %v809
    %v811 = vpop.f32.mrb[0].mxu0
    %812 = vdwg.mxu0
    %813 = vrot.lane.b32.xlu0 %v244, 96
    %v814 = vpop.permute.xlu0 %813
    %815 = vrot.lane.b32.xlu0 %v246, 96
    %v816 = vpop.permute.xlu0 %815
    %817 = vrot.lane.b32.xlu0 %v248, 96
    %v818 = vpop.permute.xlu0 %817
    %819 = vrot.lane.b32.xlu0 %v250, 96
    %v820 = vpop.permute.xlu0 %819
    %v821 = vsel %vm275, %v244, 0
    %v823 = vsel %vm275, %v246, 0
    %v825 = vsel %vm275, %v248, 0
    %v827 = vsel %vm275, %v250, 0
    %v829 = vsel %vm275, %v814, 0
    %v831 = vsel %vm275, %v816, 0
    %v833 = vsel %vm275, %v818, 0
    %v835 = vsel %vm275, %v820, 0
    %837 = vmatprep.subr.mxu0 0.0
    %838 = vmatpush1.xpose.msra.mxu0 %v829
    %839 = vmatprep.subr.mxu0 0.0
    %840 = vmatpush1.xpose.msra.mxu0 %v831
    %841 = vmatprep.subr.mxu0 0.0
    %842 = vmatpush1.xpose.msra.mxu0 %v833
    %843 = vmatprep.subr.mxu0 0.0
    %844 = vmatpush1.xpose.msra.mxu0 %v835
    %845 = vmatprep.subr.mxu0 0.0
    %846 = vmatpush1.xpose.msra.mxu0 0.0
    %847 = vmatprep.subr.mxu0 0.0
    %848 = vmatpush1.xpose.msra.mxu0 0.0
    %849 = vmatprep.subr.mxu0 0.0
    %850 = vmatpush1.xpose.msra.mxu0 0.0
    %851 = vmatprep.subr.mxu0 0.0
    %852 = vmatpush1.xpose.msra.mxu0 0.0
    %853 = vmatprep.subr.mxu0 0.0
    %854 = vmatpush1.xpose.msra.mxu0 0.0
    %855 = vmatprep.subr.mxu0 0.0
    %856 = vmatpush1.xpose.msra.mxu0 0.0
    %857 = vmatprep.subr.mxu0 0.0
    %858 = vmatpush1.xpose.msra.mxu0 0.0
    %859 = vmatprep.subr.mxu0 0.0
    %860 = vmatpush1.xpose.msra.mxu0 0.0
    %861 = vmatprep.subr.mxu0 0.0
    %862 = vmatpush1.xpose.msra.mxu0 0.0
    %863 = vmatprep.subr.mxu0 0.0
    %864 = vmatpush1.xpose.msra.mxu0 0.0
    %865 = vmatprep.subr.mxu0 0.0
    %866 = vmatpush1.xpose.msra.mxu0 0.0
    %867 = vmatprep.subr.mxu0 0.0
    %868 = vmatpush1.xpose.msra.mxu0 0.0
    %869 = vmatprep.subr.mxu0 0.0
    %870 = vmatpush1.xpose.msra.mxu0 0.0
    %871 = vmatprep.subr.mxu0 0.0
    %872 = vmatpush1.xpose.msra.mxu0 0.0
    %873 = vmatprep.subr.mxu0 0.0
    %874 = vmatpush1.xpose.msra.mxu0 0.0
    %875 = vmatprep.subr.mxu0 0.0
    %876 = vmatpush1.xpose.msra.mxu0 0.0
    %877 = vmatprep.subr.mxu0 0.0
    %878 = vmatpush1.xpose.msra.mxu0 0.0
    %879 = vmatprep.subr.mxu0 0.0
    %880 = vmatpush1.xpose.msra.mxu0 0.0
    %881 = vmatprep.subr.mxu0 0.0
    %882 = vmatpush1.xpose.msra.mxu0 0.0
    %883 = vmatprep.subr.mxu0 0.0
    %884 = vmatpush1.xpose.msra.mxu0 0.0
    %885 = vmatprep.subr.mxu0 0.0
    %886 = vmatpush1.xpose.msra.mxu0 0.0
    %887 = vmatprep.subr.mxu0 0.0
    %888 = vmatpush1.xpose.msra.mxu0 0.0
    %889 = vmatprep.subr.mxu0 0.0
    %890 = vmatpush1.xpose.msra.mxu0 0.0
    %891 = vmatprep.subr.mxu0 0.0
    %892 = vmatpush1.xpose.msra.mxu0 0.0
    %893 = vmatprep.subr.mxu0 0.0
    %894 = vmatpush1.xpose.msra.mxu0 0.0
    %895 = vmatprep.subr.mxu0 0.0
    %896 = vmatpush1.xpose.msra.mxu0 0.0
    %897 = vmatprep.subr.mxu0 0.0
    %898 = vmatpush1.xpose.msra.mxu0 0.0
    %899 = vmatprep.subr.mxu0 0.0
    %900 = vmatpush1.xpose.msra.mxu0 0.0
    %901 = vmatprep.mubr.f32.mxu0 0.0
    %902 = vmatmul.mubr.f32.gmra.mrb[0].mxu0 %v821
    %v903 = vpop.f32.mrb[0].mxu0
    %v904 = vadd.f32 0.0, %v903
    %v905 = vpop.f32.mrb[0].mxu0
    %906 = vmatprep.mubr.f32.mxu0 0.0
    %907 = vmatmul.mubr.f32.gmra.mrb[0].mxu0 %v823
    %v908 = vpop.f32.mrb[0].mxu0
    %v909 = vadd.f32 0.0, %v908
    %v910 = vpop.f32.mrb[0].mxu0
    %911 = vmatprep.mubr.f32.mxu0 0.0
    %912 = vmatmul.mubr.f32.gmra.mrb[0].mxu0 %v825
    %v913 = vpop.f32.mrb[0].mxu0
    %v914 = vadd.f32 0.0, %v913
    %v915 = vpop.f32.mrb[0].mxu0
    %916 = vmatprep.mubr.f32.mxu0 0.0
    %917 = vmatmul.mubr.f32.gmra.mrb[0].mxu0 %v827
    %v918 = vpop.f32.mrb[0].mxu0
    %v919 = vadd.f32 0.0, %v918
    %v920 = vpop.f32.mrb[0].mxu0
    %921 = vdwg.mxu0
    %922 = vrot.lane.b32.xlu0 %v252, 96
    %v923 = vpop.permute.xlu0 %922
    %924 = vrot.lane.b32.xlu0 %v254, 96
    %v925 = vpop.permute.xlu0 %924
    %926 = vrot.lane.b32.xlu0 %v256, 96
    %v927 = vpop.permute.xlu0 %926
    %928 = vrot.lane.b32.xlu0 %v258, 96
    %v929 = vpop.permute.xlu0 %928
    %v930 = vsel %vm275, %v252, 0
    %v932 = vsel %vm275, %v254, 0
    %v934 = vsel %vm275, %v256, 0
    %v936 = vsel %vm275, %v258, 0
    %v938 = vsel %vm275, %v923, 0
    %v940 = vsel %vm275, %v925, 0
    %v942 = vsel %vm275, %v927, 0
    %v944 = vsel %vm275, %v929, 0
    %946 = vmatprep.subr.mxu0 0.0
    %947 = vmatpush1.xpose.msra.mxu0 %v938
    %948 = vmatprep.subr.mxu0 0.0
    %949 = vmatpush1.xpose.msra.mxu0 %v940
    %950 = vmatprep.subr.mxu0 0.0
    %951 = vmatpush1.xpose.msra.mxu0 %v942
    %952 = vmatprep.subr.mxu0 0.0
    %953 = vmatpush1.xpose.msra.mxu0 %v944
    %954 = vmatprep.subr.mxu0 0.0
    %955 = vmatpush1.xpose.msra.mxu0 0.0
    %956 = vmatprep.subr.mxu0 0.0
    %957 = vmatpush1.xpose.msra.mxu0 0.0
    %958 = vmatprep.subr.mxu0 0.0
    %959 = vmatpush1.xpose.msra.mxu0 0.0
    %960 = vmatprep.subr.mxu0 0.0
    %961 = vmatpush1.xpose.msra.mxu0 0.0
    %962 = vmatprep.subr.mxu0 0.0
    %963 = vmatpush1.xpose.msra.mxu0 0.0
    %964 = vmatprep.subr.mxu0 0.0
    %965 = vmatpush1.xpose.msra.mxu0 0.0
    %966 = vmatprep.subr.mxu0 0.0
    %967 = vmatpush1.xpose.msra.mxu0 0.0
    %968 = vmatprep.subr.mxu0 0.0
    %969 = vmatpush1.xpose.msra.mxu0 0.0
    %970 = vmatprep.subr.mxu0 0.0
    %971 = vmatpush1.xpose.msra.mxu0 0.0
    %972 = vmatprep.subr.mxu0 0.0
    %973 = vmatpush1.xpose.msra.mxu0 0.0
    %974 = vmatprep.subr.mxu0 0.0
    %975 = vmatpush1.xpose.msra.mxu0 0.0
    %976 = vmatprep.subr.mxu0 0.0
    %977 = vmatpush1.xpose.msra.mxu0 0.0
    %978 = vmatprep.subr.mxu0 0.0
    %979 = vmatpush1.xpose.msra.mxu0 0.0
    %980 = vmatprep.subr.mxu0 0.0
    %981 = vmatpush1.xpose.msra.mxu0 0.0
    %982 = vmatprep.subr.mxu0 0.0
    %983 = vmatpush1.xpose.msra.mxu0 0.0
    %984 = vmatprep.subr.mxu0 0.0
    %985 = vmatpush1.xpose.msra.mxu0 0.0
    %986 = vmatprep.subr.mxu0 0.0
    %987 = vmatpush1.xpose.msra.mxu0 0.0
    %988 = vmatprep.subr.mxu0 0.0
    %989 = vmatpush1.xpose.msra.mxu0 0.0
    %990 = vmatprep.subr.mxu0 0.0
    %991 = vmatpush1.xpose.msra.mxu0 0.0
    %992 = vmatprep.subr.mxu0 0.0
    %993 = vmatpush1.xpose.msra.mxu0 0.0
    %994 = vmatprep.subr.mxu0 0.0
    %995 = vmatpush1.xpose.msra.mxu0 0.0
    %996 = vmatprep.subr.mxu0 0.0
    %997 = vmatpush1.xpose.msra.mxu0 0.0
    %998 = vmatprep.subr.mxu0 0.0
    %999 = vmatpush1.xpose.msra.mxu0 0.0
    %1000 = vmatprep.subr.mxu0 0.0
    %1001 = vmatpush1.xpose.msra.mxu0 0.0
    %1002 = vmatprep.subr.mxu0 0.0
    %1003 = vmatpush1.xpose.msra.mxu0 0.0
    %1004 = vmatprep.subr.mxu0 0.0
    %1005 = vmatpush1.xpose.msra.mxu0 0.0
    %1006 = vmatprep.subr.mxu0 0.0
    %1007 = vmatpush1.xpose.msra.mxu0 0.0
    %1008 = vmatprep.subr.mxu0 0.0
    %1009 = vmatpush1.xpose.msra.mxu0 0.0
    %1010 = vmatprep.mubr.f32.mxu0 0.0
    %1011 = vmatmul.mubr.f32.gmra.mrb[0].mxu0 %v930
    %v1012 = vpop.f32.mrb[0].mxu0
    %v1013 = vadd.f32 0.0, %v1012
    %v1014 = vpop.f32.mrb[0].mxu0
    %1015 = vmatprep.mubr.f32.mxu0 0.0
    %1016 = vmatmul.mubr.f32.gmra.mrb[0].mxu0 %v932
    %v1017 = vpop.f32.mrb[0].mxu0
    %v1018 = vadd.f32 0.0, %v1017
    %v1019 = vpop.f32.mrb[0].mxu0
    %1020 = vmatprep.mubr.f32.mxu0 0.0
    %1021 = vmatmul.mubr.f32.gmra.mrb[0].mxu0 %v934
    %v1022 = vpop.f32.mrb[0].mxu0
    %v1023 = vadd.f32 0.0, %v1022
    %v1024 = vpop.f32.mrb[0].mxu0
    %1025 = vmatprep.mubr.f32.mxu0 0.0
    %1026 = vmatmul.mubr.f32.gmra.mrb[0].mxu0 %v936
    %v1027 = vpop.f32.mrb[0].mxu0
    %v1028 = vadd.f32 0.0, %v1027
    %v1029 = vpop.f32.mrb[0].mxu0
    %1030 = vdwg.mxu0
    %1031 = vrot.lane.b32.xlu0 %v260, 96
    %v1032 = vpop.permute.xlu0 %1031
    %1033 = vrot.lane.b32.xlu0 %v262, 96
    %v1034 = vpop.permute.xlu0 %1033
    %1035 = vrot.lane.b32.xlu0 %v264, 96
    %v1036 = vpop.permute.xlu0 %1035
    %1037 = vrot.lane.b32.xlu0 %v266, 96
    %v1038 = vpop.permute.xlu0 %1037
    %v1039 = vsel %vm275, %v260, 0
    %v1041 = vsel %vm275, %v262, 0
    %v1043 = vsel %vm275, %v264, 0
    %v1045 = vsel %vm275, %v266, 0
    %v1047 = vsel %vm275, %v1032, 0
    %v1049 = vsel %vm275, %v1034, 0
    %v1051 = vsel %vm275, %v1036, 0
    %v1053 = vsel %vm275, %v1038, 0
    %1055 = vmatprep.subr.mxu0 0.0
    %1056 = vmatpush1.xpose.msra.mxu0 %v1047
    %1057 = vmatprep.subr.mxu0 0.0
    %1058 = vmatpush1.xpose.msra.mxu0 %v1049
    %1059 = vmatprep.subr.mxu0 0.0
    %1060 = vmatpush1.xpose.msra.mxu0 %v1051
    %1061 = vmatprep.subr.mxu0 0.0
    %1062 = vmatpush1.xpose.msra.mxu0 %v1053
    %1063 = vmatprep.subr.mxu0 0.0
    %1064 = vmatpush1.xpose.msra.mxu0 0.0
    %1065 = vmatprep.subr.mxu0 0.0
    %1066 = vmatpush1.xpose.msra.mxu0 0.0
    %1067 = vmatprep.subr.mxu0 0.0
    %1068 = vmatpush1.xpose.msra.mxu0 0.0
    %1069 = vmatprep.subr.mxu0 0.0
    %1070 = vmatpush1.xpose.msra.mxu0 0.0
    %1071 = vmatprep.subr.mxu0 0.0
    %1072 = vmatpush1.xpose.msra.mxu0 0.0
    %1073 = vmatprep.subr.mxu0 0.0
    %1074 = vmatpush1.xpose.msra.mxu0 0.0
    %1075 = vmatprep.subr.mxu0 0.0
    %1076 = vmatpush1.xpose.msra.mxu0 0.0
    %1077 = vmatprep.subr.mxu0 0.0
    %1078 = vmatpush1.xpose.msra.mxu0 0.0
    %1079 = vmatprep.subr.mxu0 0.0
    %1080 = vmatpush1.xpose.msra.mxu0 0.0
    %1081 = vmatprep.subr.mxu0 0.0
    %1082 = vmatpush1.xpose.msra.mxu0 0.0
    %1083 = vmatprep.subr.mxu0 0.0
    %1084 = vmatpush1.xpose.msra.mxu0 0.0
    %1085 = vmatprep.subr.mxu0 0.0
    %1086 = vmatpush1.xpose.msra.mxu0 0.0
    %1087 = vmatprep.subr.mxu0 0.0
    %1088 = vmatpush1.xpose.msra.mxu0 0.0
    %1089 = vmatprep.subr.mxu0 0.0
    %1090 = vmatpush1.xpose.msra.mxu0 0.0
    %1091 = vmatprep.subr.mxu0 0.0
    %1092 = vmatpush1.xpose.msra.mxu0 0.0
    %1093 = vmatprep.subr.mxu0 0.0
    %1094 = vmatpush1.xpose.msra.mxu0 0.0
    %1095 = vmatprep.subr.mxu0 0.0
    %1096 = vmatpush1.xpose.msra.mxu0 0.0
    %1097 = vmatprep.subr.mxu0 0.0
    %1098 = vmatpush1.xpose.msra.mxu0 0.0
    %1099 = vmatprep.subr.mxu0 0.0
    %1100 = vmatpush1.xpose.msra.mxu0 0.0
    %1101 = vmatprep.subr.mxu0 0.0
    %1102 = vmatpush1.xpose.msra.mxu0 0.0
    %1103 = vmatprep.subr.mxu0 0.0
    %1104 = vmatpush1.xpose.msra.mxu0 0.0
    %1105 = vmatprep.subr.mxu0 0.0
    %1106 = vmatpush1.xpose.msra.mxu0 0.0
    %1107 = vmatprep.subr.mxu0 0.0
    %1108 = vmatpush1.xpose.msra.mxu0 0.0
    %1109 = vmatprep.subr.mxu0 0.0
    %1110 = vmatpush1.xpose.msra.mxu0 0.0
    %1111 = vmatprep.subr.mxu0 0.0
    %1112 = vmatpush1.xpose.msra.mxu0 0.0
    %1113 = vmatprep.subr.mxu0 0.0
    %1114 = vmatpush1.xpose.msra.mxu0 0.0
    %1115 = vmatprep.subr.mxu0 0.0
    %1116 = vmatpush1.xpose.msra.mxu0 0.0
    %1117 = vmatprep.subr.mxu0 0.0
    %1118 = vmatpush1.xpose.msra.mxu0 0.0
    %1119 = vmatprep.mubr.f32.mxu0 0.0
    %1120 = vmatmul.mubr.f32.gmra.mrb[0].mxu0 %v1039
    %v1121 = vpop.f32.mrb[0].mxu0
    %v1122 = vadd.f32 0.0, %v1121
    %v1123 = vpop.f32.mrb[0].mxu0
    %1124 = vmatprep.mubr.f32.mxu0 0.0
    %1125 = vmatmul.mubr.f32.gmra.mrb[0].mxu0 %v1041
    %v1126 = vpop.f32.mrb[0].mxu0
    %v1127 = vadd.f32 0.0, %v1126
    %v1128 = vpop.f32.mrb[0].mxu0
    %1129 = vmatprep.mubr.f32.mxu0 0.0
    %1130 = vmatmul.mubr.f32.gmra.mrb[0].mxu0 %v1043
    %v1131 = vpop.f32.mrb[0].mxu0
    %v1132 = vadd.f32 0.0, %v1131
    %v1133 = vpop.f32.mrb[0].mxu0
    %1134 = vmatprep.mubr.f32.mxu0 0.0
    %1135 = vmatmul.mubr.f32.gmra.mrb[0].mxu0 %v1045
    %v1136 = vpop.f32.mrb[0].mxu0
    %v1137 = vadd.f32 0.0, %v1136
    %v1138 = vpop.f32.mrb[0].mxu0
    %1139 = vdwg.mxu0
    %v1140 = vlaneseq
    %v1141 = vshrl.u32 %v1140, 7
    %v1142 = vadd.s32 %v1141, 8
    %v1143 = vadd.s32 %v1141, 16
    %v1144 = vadd.s32 %v1141, 24
    %v1145 = vlaneseq
    %v1146 = vand.u32 %v1145, 127
    %v1147 = vsub.s32 %v1141, %v1146
    %v1148 = vsub.s32 %v1142, %v1146
    %v1149 = vsub.s32 %v1143, %v1146
    %v1150 = vsub.s32 %v1144, %v1146
    %vm1151 = vcmp.lt.s32.totalorder %v1147, 0
    %v1152 = vsub.s32 0, %v1147
    %v1153 = vsel %vm1151, %v1152, %v1147
    %vm1154 = vcmp.lt.s32.totalorder %v1148, 0
    %v1155 = vsub.s32 0, %v1148
    %v1156 = vsel %vm1154, %v1155, %v1148
    %vm1157 = vcmp.lt.s32.totalorder %v1149, 0
    %v1158 = vsub.s32 0, %v1149
    %v1159 = vsel %vm1157, %v1158, %v1149
    %vm1160 = vcmp.lt.s32.totalorder %v1150, 0
    %v1161 = vsub.s32 0, %v1150
    %v1162 = vsel %vm1160, %v1161, %v1150
    %vm1163 = vcmp.le.s32.totalorder %v1153, 8
    %vm1164 = vcmp.le.s32.totalorder %v1156, 8
    %vm1165 = vcmp.le.s32.totalorder %v1159, 8
    %vm1166 = vcmp.le.s32.totalorder %v1162, 8
    %v1167 = vsel %vm1163, 1, 0
    %v1168 = vsel %vm1164, 1, 0
    %v1169 = vsel %vm1165, 1, 0
    %v1170 = vsel %vm1166, 1, 0
    %vm1171 = vcmp.eq.s32.totalorder %v1167, 1
    %vm1172 = vcmp.eq.s32.totalorder %v1168, 1
    %vm1173 = vcmp.eq.s32.totalorder %v1169, 1
    %vm1174 = vcmp.eq.s32.totalorder %v1170, 1
    %v1175 = vsel %vm1171, %v359, -inf
    %v1176 = vsel %vm1172, %v364, -inf
    %v1177 = vsel %vm1173, %v369, -inf
    %v1178 = vsel %vm1174, %v374, -inf
    %v1179 = vsel %vm1171, %v468, -inf
    %v1180 = vsel %vm1172, %v473, -inf
    %v1181 = vsel %vm1173, %v478, -inf
    %v1182 = vsel %vm1174, %v483, -inf
    %v1183 = vsel %vm1171, %v577, -inf
    %v1184 = vsel %vm1172, %v582, -inf
    %v1185 = vsel %vm1173, %v587, -inf
    %v1186 = vsel %vm1174, %v592, -inf
    %v1187 = vsel %vm1171, %v686, -inf
    %v1188 = vsel %vm1172, %v691, -inf
    %v1189 = vsel %vm1173, %v696, -inf
    %v1190 = vsel %vm1174, %v701, -inf
    %v1191 = vsel %vm1171, %v795, -inf
    %v1192 = vsel %vm1172, %v800, -inf
    %v1193 = vsel %vm1173, %v805, -inf
    %v1194 = vsel %vm1174, %v810, -inf
    %v1195 = vsel %vm1171, %v904, -inf
    %v1196 = vsel %vm1172, %v909, -inf
    %v1197 = vsel %vm1173, %v914, -inf
    %v1198 = vsel %vm1174, %v919, -inf
    %v1199 = vsel %vm1171, %v1013, -inf
    %v1200 = vsel %vm1172, %v1018, -inf
    %v1201 = vsel %vm1173, %v1023, -inf
    %v1202 = vsel %vm1174, %v1028, -inf
    %v1203 = vsel %vm1171, %v1122, -inf
    %v1204 = vsel %vm1172, %v1127, -inf
    %v1205 = vsel %vm1173, %v1132, -inf
    %v1206 = vsel %vm1174, %v1137, -inf
    %v1207 = vsel %vm81, %v1175, -inf
    %1208 = vmax.xlane.f32.xlu0 %v1207
    %v1209 = vpop.xlane.xlu0 %1208
    %v1210 = vsel %vm81, %v1176, -inf
    %1211 = vmax.xlane.f32.xlu0 %v1210
    %v1212 = vpop.xlane.xlu0 %1211
    %v1213 = vsel %vm81, %v1177, -inf
    %1214 = vmax.xlane.f32.xlu0 %v1213
    %v1215 = vpop.xlane.xlu0 %1214
    %v1216 = vsel %vm81, %v1178, -inf
    %1217 = vmax.xlane.f32.xlu0 %v1216
    %v1218 = vpop.xlane.xlu0 %1217
    %v1219 = vsel %vm81, %v1179, -inf
    %1220 = vmax.xlane.f32.xlu0 %v1219
    %v1221 = vpop.xlane.xlu0 %1220
    %v1222 = vsel %vm81, %v1180, -inf
    %1223 = vmax.xlane.f32.xlu0 %v1222
    %v1224 = vpop.xlane.xlu0 %1223
    %v1225 = vsel %vm81, %v1181, -inf
    %1226 = vmax.xlane.f32.xlu0 %v1225
    %v1227 = vpop.xlane.xlu0 %1226
    %v1228 = vsel %vm81, %v1182, -inf
    %1229 = vmax.xlane.f32.xlu0 %v1228
    %v1230 = vpop.xlane.xlu0 %1229
    %v1231 = vsel %vm81, %v1183, -inf
    %1232 = vmax.xlane.f32.xlu0 %v1231
    %v1233 = vpop.xlane.xlu0 %1232
    %v1234 = vsel %vm81, %v1184, -inf
    %1235 = vmax.xlane.f32.xlu0 %v1234
    %v1236 = vpop.xlane.xlu0 %1235
    %v1237 = vsel %vm81, %v1185, -inf
    %1238 = vmax.xlane.f32.xlu0 %v1237
    %v1239 = vpop.xlane.xlu0 %1238
    %v1240 = vsel %vm81, %v1186, -inf
    %1241 = vmax.xlane.f32.xlu0 %v1240
    %v1242 = vpop.xlane.xlu0 %1241
    %v1243 = vsel %vm81, %v1187, -inf
    %1244 = vmax.xlane.f32.xlu0 %v1243
    %v1245 = vpop.xlane.xlu0 %1244
    %v1246 = vsel %vm81, %v1188, -inf
    %1247 = vmax.xlane.f32.xlu0 %v1246
    %v1248 = vpop.xlane.xlu0 %1247
    %v1249 = vsel %vm81, %v1189, -inf
    %1250 = vmax.xlane.f32.xlu0 %v1249
    %v1251 = vpop.xlane.xlu0 %1250
    %v1252 = vsel %vm81, %v1190, -inf
    %1253 = vmax.xlane.f32.xlu0 %v1252
    %v1254 = vpop.xlane.xlu0 %1253
    %v1255 = vsel %vm81, %v1191, -inf
    %1256 = vmax.xlane.f32.xlu0 %v1255
    %v1257 = vpop.xlane.xlu0 %1256
    %v1258 = vsel %vm81, %v1192, -inf
    %1259 = vmax.xlane.f32.xlu0 %v1258
    %v1260 = vpop.xlane.xlu0 %1259
    %v1261 = vsel %vm81, %v1193, -inf
    %1262 = vmax.xlane.f32.xlu0 %v1261
    %v1263 = vpop.xlane.xlu0 %1262
    %v1264 = vsel %vm81, %v1194, -inf
    %1265 = vmax.xlane.f32.xlu0 %v1264
    %v1266 = vpop.xlane.xlu0 %1265
    %v1267 = vsel %vm81, %v1195, -inf
    %1268 = vmax.xlane.f32.xlu0 %v1267
    %v1269 = vpop.xlane.xlu0 %1268
    %v1270 = vsel %vm81, %v1196, -inf
    %1271 = vmax.xlane.f32.xlu0 %v1270
    %v1272 = vpop.xlane.xlu0 %1271
    %v1273 = vsel %vm81, %v1197, -inf
    %1274 = vmax.xlane.f32.xlu0 %v1273
    %v1275 = vpop.xlane.xlu0 %1274
    %v1276 = vsel %vm81, %v1198, -inf
    %1277 = vmax.xlane.f32.xlu0 %v1276
    %v1278 = vpop.xlane.xlu0 %1277
    %v1279 = vsel %vm81, %v1199, -inf
    %1280 = vmax.xlane.f32.xlu0 %v1279
    %v1281 = vpop.xlane.xlu0 %1280
    %v1282 = vsel %vm81, %v1200, -inf
    %1283 = vmax.xlane.f32.xlu0 %v1282
    %v1284 = vpop.xlane.xlu0 %1283
    %v1285 = vsel %vm81, %v1201, -inf
    %1286 = vmax.xlane.f32.xlu0 %v1285
    %v1287 = vpop.xlane.xlu0 %1286
    %v1288 = vsel %vm81, %v1202, -inf
    %1289 = vmax.xlane.f32.xlu0 %v1288
    %v1290 = vpop.xlane.xlu0 %1289
    %v1291 = vsel %vm81, %v1203, -inf
    %1292 = vmax.xlane.f32.xlu0 %v1291
    %v1293 = vpop.xlane.xlu0 %1292
    %v1294 = vsel %vm81, %v1204, -inf
    %1295 = vmax.xlane.f32.xlu0 %v1294
    %v1296 = vpop.xlane.xlu0 %1295
    %v1297 = vsel %vm81, %v1205, -inf
    %1298 = vmax.xlane.f32.xlu0 %v1297
    %v1299 = vpop.xlane.xlu0 %1298
    %v1300 = vsel %vm81, %v1206, -inf
    %1301 = vmax.xlane.f32.xlu0 %v1300
    %v1302 = vpop.xlane.xlu0 %1301
    %v1303 = vsub.f32 %v1175, %v1209
    %v1304 = vsub.f32 %v1176, %v1212
    %v1305 = vsub.f32 %v1177, %v1215
    %v1306 = vsub.f32 %v1178, %v1218
    %v1307 = vsub.f32 %v1179, %v1221
    %v1308 = vsub.f32 %v1180, %v1224
    %v1309 = vsub.f32 %v1181, %v1227
    %v1310 = vsub.f32 %v1182, %v1230
    %v1311 = vsub.f32 %v1183, %v1233
    %v1312 = vsub.f32 %v1184, %v1236
    %v1313 = vsub.f32 %v1185, %v1239
    %v1314 = vsub.f32 %v1186, %v1242
    %v1315 = vsub.f32 %v1187, %v1245
    %v1316 = vsub.f32 %v1188, %v1248
    %v1317 = vsub.f32 %v1189, %v1251
    %v1318 = vsub.f32 %v1190, %v1254
    %v1319 = vsub.f32 %v1191, %v1257
    %v1320 = vsub.f32 %v1192, %v1260
    %v1321 = vsub.f32 %v1193, %v1263
    %v1322 = vsub.f32 %v1194, %v1266
    %v1323 = vsub.f32 %v1195, %v1269
    %v1324 = vsub.f32 %v1196, %v1272
    %v1325 = vsub.f32 %v1197, %v1275
    %v1326 = vsub.f32 %v1198, %v1278
    %v1327 = vsub.f32 %v1199, %v1281
    %v1328 = vsub.f32 %v1200, %v1284
    %v1329 = vsub.f32 %v1201, %v1287
    %v1330 = vsub.f32 %v1202, %v1290
    %v1331 = vsub.f32 %v1203, %v1293
    %v1332 = vsub.f32 %v1204, %v1296
    %v1333 = vsub.f32 %v1205, %v1299
    %v1334 = vsub.f32 %v1206, %v1302
    %v1335 = vmul.f32 %v1303, 1.442695
    %v1336 = vpow.pop %v1335
    %v1337 = vmul.f32 %v1304, 1.442695
    %v1338 = vpow.pop %v1337
    %v1339 = vmul.f32 %v1305, 1.442695
    %v1340 = vpow.pop %v1339
    %v1341 = vmul.f32 %v1306, 1.442695
    %v1342 = vpow.pop %v1341
    %v1343 = vmul.f32 %v1307, 1.442695
    %v1344 = vpow.pop %v1343
    %v1345 = vmul.f32 %v1308, 1.442695
    %v1346 = vpow.pop %v1345
    %v1347 = vmul.f32 %v1309, 1.442695
    %v1348 = vpow.pop %v1347
    %v1349 = vmul.f32 %v1310, 1.442695
    %v1350 = vpow.pop %v1349
    %v1351 = vmul.f32 %v1311, 1.442695
    %v1352 = vpow.pop %v1351
    %v1353 = vmul.f32 %v1312, 1.442695
    %v1354 = vpow.pop %v1353
    %v1355 = vmul.f32 %v1313, 1.442695
    %v1356 = vpow.pop %v1355
    %v1357 = vmul.f32 %v1314, 1.442695
    %v1358 = vpow.pop %v1357
    %v1359 = vmul.f32 %v1315, 1.442695
    %v1360 = vpow.pop %v1359
    %v1361 = vmul.f32 %v1316, 1.442695
    %v1362 = vpow.pop %v1361
    %v1363 = vmul.f32 %v1317, 1.442695
    %v1364 = vpow.pop %v1363
    %v1365 = vmul.f32 %v1318, 1.442695
    %v1366 = vpow.pop %v1365
    %v1367 = vmul.f32 %v1319, 1.442695
    %v1368 = vpow.pop %v1367
    %v1369 = vmul.f32 %v1320, 1.442695
    %v1370 = vpow.pop %v1369
    %v1371 = vmul.f32 %v1321, 1.442695
    %v1372 = vpow.pop %v1371
    %v1373 = vmul.f32 %v1322, 1.442695
    %v1374 = vpow.pop %v1373
    %v1375 = vmul.f32 %v1323, 1.442695
    %v1376 = vpow.pop %v1375
    %v1377 = vmul.f32 %v1324, 1.442695
    %v1378 = vpow.pop %v1377
    %v1379 = vmul.f32 %v1325, 1.442695
    %v1380 = vpow.pop %v1379
    %v1381 = vmul.f32 %v1326, 1.442695
    %v1382 = vpow.pop %v1381
    %v1383 = vmul.f32 %v1327, 1.442695
    %v1384 = vpow.pop %v1383
    %v1385 = vmul.f32 %v1328, 1.442695
    %v1386 = vpow.pop %v1385
    %v1387 = vmul.f32 %v1329, 1.442695
    %v1388 = vpow.pop %v1387
    %v1389 = vmul.f32 %v1330, 1.442695
    %v1390 = vpow.pop %v1389
    %v1391 = vmul.f32 %v1331, 1.442695
    %v1392 = vpow.pop %v1391
    %v1393 = vmul.f32 %v1332, 1.442695
    %v1394 = vpow.pop %v1393
    %v1395 = vmul.f32 %v1333, 1.442695
    %v1396 = vpow.pop %v1395
    %v1397 = vmul.f32 %v1334, 1.442695
    %v1398 = vpow.pop %v1397
    %v1399 = vsel %vm81, %v1336, 0.0
    %1400 = vadd.xlane.f32.xlu0 %v1399
    %v1401 = vpop.xlane.xlu0 %1400
    %v1402 = vsel %vm81, %v1338, 0.0
    %1403 = vadd.xlane.f32.xlu0 %v1402
    %v1404 = vpop.xlane.xlu0 %1403
    %v1405 = vsel %vm81, %v1340, 0.0
    %1406 = vadd.xlane.f32.xlu0 %v1405
    %v1407 = vpop.xlane.xlu0 %1406
    %v1408 = vsel %vm81, %v1342, 0.0
    %1409 = vadd.xlane.f32.xlu0 %v1408
    %v1410 = vpop.xlane.xlu0 %1409
    %v1411 = vsel %vm81, %v1344, 0.0
    %1412 = vadd.xlane.f32.xlu0 %v1411
    %v1413 = vpop.xlane.xlu0 %1412
    %v1414 = vsel %vm81, %v1346, 0.0
    %1415 = vadd.xlane.f32.xlu0 %v1414
    %v1416 = vpop.xlane.xlu0 %1415
    %v1417 = vsel %vm81, %v1348, 0.0
    %1418 = vadd.xlane.f32.xlu0 %v1417
    %v1419 = vpop.xlane.xlu0 %1418
    %v1420 = vsel %vm81, %v1350, 0.0
    %1421 = vadd.xlane.f32.xlu0 %v1420
    %v1422 = vpop.xlane.xlu0 %1421
    %v1423 = vsel %vm81, %v1352, 0.0
    %1424 = vadd.xlane.f32.xlu0 %v1423
    %v1425 = vpop.xlane.xlu0 %1424
    %v1426 = vsel %vm81, %v1354, 0.0
    %1427 = vadd.xlane.f32.xlu0 %v1426
    %v1428 = vpop.xlane.xlu0 %1427
    %v1429 = vsel %vm81, %v1356, 0.0
    %1430 = vadd.xlane.f32.xlu0 %v1429
    %v1431 = vpop.xlane.xlu0 %1430
    %v1432 = vsel %vm81, %v1358, 0.0
    %1433 = vadd.xlane.f32.xlu0 %v1432
    %v1434 = vpop.xlane.xlu0 %1433
    %v1435 = vsel %vm81, %v1360, 0.0
    %1436 = vadd.xlane.f32.xlu0 %v1435
    %v1437 = vpop.xlane.xlu0 %1436
    %v1438 = vsel %vm81, %v1362, 0.0
    %1439 = vadd.xlane.f32.xlu0 %v1438
    %v1440 = vpop.xlane.xlu0 %1439
    %v1441 = vsel %vm81, %v1364, 0.0
    %1442 = vadd.xlane.f32.xlu0 %v1441
    %v1443 = vpop.xlane.xlu0 %1442
    %v1444 = vsel %vm81, %v1366, 0.0
    %1445 = vadd.xlane.f32.xlu0 %v1444
    %v1446 = vpop.xlane.xlu0 %1445
    %v1447 = vsel %vm81, %v1368, 0.0
    %1448 = vadd.xlane.f32.xlu0 %v1447
    %v1449 = vpop.xlane.xlu0 %1448
    %v1450 = vsel %vm81, %v1370, 0.0
    %1451 = vadd.xlane.f32.xlu0 %v1450
    %v1452 = vpop.xlane.xlu0 %1451
    %v1453 = vsel %vm81, %v1372, 0.0
    %1454 = vadd.xlane.f32.xlu0 %v1453
    %v1455 = vpop.xlane.xlu0 %1454
    %v1456 = vsel %vm81, %v1374, 0.0
    %1457 = vadd.xlane.f32.xlu0 %v1456
    %v1458 = vpop.xlane.xlu0 %1457
    %v1459 = vsel %vm81, %v1376, 0.0
    %1460 = vadd.xlane.f32.xlu0 %v1459
    %v1461 = vpop.xlane.xlu0 %1460
    %v1462 = vsel %vm81, %v1378, 0.0
    %1463 = vadd.xlane.f32.xlu0 %v1462
    %v1464 = vpop.xlane.xlu0 %1463
    %v1465 = vsel %vm81, %v1380, 0.0
    %1466 = vadd.xlane.f32.xlu0 %v1465
    %v1467 = vpop.xlane.xlu0 %1466
    %v1468 = vsel %vm81, %v1382, 0.0
    %1469 = vadd.xlane.f32.xlu0 %v1468
    %v1470 = vpop.xlane.xlu0 %1469
    %v1471 = vsel %vm81, %v1384, 0.0
    %1472 = vadd.xlane.f32.xlu0 %v1471
    %v1473 = vpop.xlane.xlu0 %1472
    %v1474 = vsel %vm81, %v1386, 0.0
    %1475 = vadd.xlane.f32.xlu0 %v1474
    %v1476 = vpop.xlane.xlu0 %1475
    %v1477 = vsel %vm81, %v1388, 0.0
    %1478 = vadd.xlane.f32.xlu0 %v1477
    %v1479 = vpop.xlane.xlu0 %1478
    %v1480 = vsel %vm81, %v1390, 0.0
    %1481 = vadd.xlane.f32.xlu0 %v1480
    %v1482 = vpop.xlane.xlu0 %1481
    %v1483 = vsel %vm81, %v1392, 0.0
    %1484 = vadd.xlane.f32.xlu0 %v1483
    %v1485 = vpop.xlane.xlu0 %1484
    %v1486 = vsel %vm81, %v1394, 0.0
    %1487 = vadd.xlane.f32.xlu0 %v1486
    %v1488 = vpop.xlane.xlu0 %1487
    %v1489 = vsel %vm81, %v1396, 0.0
    %1490 = vadd.xlane.f32.xlu0 %v1489
    %v1491 = vpop.xlane.xlu0 %1490
    %v1492 = vsel %vm81, %v1398, 0.0
    %1493 = vadd.xlane.f32.xlu0 %v1492
    %v1494 = vpop.xlane.xlu0 %1493
    %v1495 = vrcp.pop %v1401
    %v1496 = vrcp.pop %v1404
    %v1497 = vrcp.pop %v1407
    %v1498 = vrcp.pop %v1410
    %v1499 = vrcp.pop %v1413
    %v1500 = vrcp.pop %v1416
    %v1501 = vrcp.pop %v1419
    %v1502 = vrcp.pop %v1422
    %v1503 = vrcp.pop %v1425
    %v1504 = vrcp.pop %v1428
    %v1505 = vrcp.pop %v1431
    %v1506 = vrcp.pop %v1434
    %v1507 = vrcp.pop %v1437
    %v1508 = vrcp.pop %v1440
    %v1509 = vrcp.pop %v1443
    %v1510 = vrcp.pop %v1446
    %v1511 = vrcp.pop %v1449
    %v1512 = vrcp.pop %v1452
    %v1513 = vrcp.pop %v1455
    %v1514 = vrcp.pop %v1458
    %v1515 = vrcp.pop %v1461
    %v1516 = vrcp.pop %v1464
    %v1517 = vrcp.pop %v1467
    %v1518 = vrcp.pop %v1470
    %v1519 = vrcp.pop %v1473
    %v1520 = vrcp.pop %v1476
    %v1521 = vrcp.pop %v1479
    %v1522 = vrcp.pop %v1482
    %v1523 = vrcp.pop %v1485
    %v1524 = vrcp.pop %v1488
    %v1525 = vrcp.pop %v1491
    %v1526 = vrcp.pop %v1494
    %v1527 = vmul.f32 %v1336, %v1495
    %v1528 = vmul.f32 %v1338, %v1496
    %v1529 = vmul.f32 %v1340, %v1497
    %v1530 = vmul.f32 %v1342, %v1498
    %v1531 = vmul.f32 %v1344, %v1499
    %v1532 = vmul.f32 %v1346, %v1500
    %v1533 = vmul.f32 %v1348, %v1501
    %v1534 = vmul.f32 %v1350, %v1502
    %v1535 = vmul.f32 %v1352, %v1503
    %v1536 = vmul.f32 %v1354, %v1504
    %v1537 = vmul.f32 %v1356, %v1505
    %v1538 = vmul.f32 %v1358, %v1506
    %v1539 = vmul.f32 %v1360, %v1507
    %v1540 = vmul.f32 %v1362, %v1508
    %v1541 = vmul.f32 %v1364, %v1509
    %v1542 = vmul.f32 %v1366, %v1510
    %v1543 = vmul.f32 %v1368, %v1511
    %v1544 = vmul.f32 %v1370, %v1512
    %v1545 = vmul.f32 %v1372, %v1513
    %v1546 = vmul.f32 %v1374, %v1514
    %v1547 = vmul.f32 %v1376, %v1515
    %v1548 = vmul.f32 %v1378, %v1516
    %v1549 = vmul.f32 %v1380, %v1517
    %v1550 = vmul.f32 %v1382, %v1518
    %v1551 = vmul.f32 %v1384, %v1519
    %v1552 = vmul.f32 %v1386, %v1520
    %v1553 = vmul.f32 %v1388, %v1521
    %v1554 = vmul.f32 %v1390, %v1522
    %v1555 = vmul.f32 %v1392, %v1523
    %v1556 = vmul.f32 %v1394, %v1524
    %v1557 = vmul.f32 %v1396, %v1525
    %v1558 = vmul.f32 %v1398, %v1526
    %1559 = vrot.lane.b32.xlu0 %v173, 64
    %v1560 = vpop.permute.xlu0 %1559
    %1561 = vrot.lane.b32.xlu0 %v178, 64
    %v1562 = vpop.permute.xlu0 %1561
    %1563 = vrot.lane.b32.xlu0 %v183, 64
    %v1564 = vpop.permute.xlu0 %1563
    %1565 = vrot.lane.b32.xlu0 %v188, 64
    %v1566 = vpop.permute.xlu0 %1565
    %v1572 = vsel %vm81, %v1527, 0
    %v1575 = vsel %vm81, %v1528, 0
    %v1578 = vsel %vm81, %v1529, 0
    %v1581 = vsel %vm81, %v1530, 0
    %1583 = vmatprep.subr.mxu0 0.0
    %1584 = vmatpush1.msra.mxu0 %v1560
    %1585 = vmatprep.subr.mxu0 0.0
    %1586 = vmatpush1.msra.mxu0 %v1562
    %1587 = vmatprep.subr.mxu0 0.0
    %1588 = vmatpush1.msra.mxu0 %v1564
    %1589 = vmatprep.subr.mxu0 0.0
    %1590 = vmatpush1.msra.mxu0 %v1566
    %1591 = vmatprep.subr.mxu0 0.0
    %1592 = vmatpush1.msra.mxu0 0.0
    %1593 = vmatprep.subr.mxu0 0.0
    %1594 = vmatpush1.msra.mxu0 0.0
    %1595 = vmatprep.subr.mxu0 0.0
    %1596 = vmatpush1.msra.mxu0 0.0
    %1597 = vmatprep.subr.mxu0 0.0
    %1598 = vmatpush1.msra.mxu0 0.0
    %1599 = vmatprep.subr.mxu0 0.0
    %1600 = vmatpush1.msra.mxu0 0.0
    %1601 = vmatprep.subr.mxu0 0.0
    %1602 = vmatpush1.msra.mxu0 0.0
    %1603 = vmatprep.subr.mxu0 0.0
    %1604 = vmatpush1.msra.mxu0 0.0
    %1605 = vmatprep.subr.mxu0 0.0
    %1606 = vmatpush1.msra.mxu0 0.0
    %1607 = vmatprep.subr.mxu0 0.0
    %1608 = vmatpush1.msra.mxu0 0.0
    %1609 = vmatprep.subr.mxu0 0.0
    %1610 = vmatpush1.msra.mxu0 0.0
    %1611 = vmatprep.subr.mxu0 0.0
    %1612 = vmatpush1.msra.mxu0 0.0
    %1613 = vmatprep.subr.mxu0 0.0
    %1614 = vmatpush1.msra.mxu0 0.0
    %1615 = vmatprep.subr.mxu0 0.0
    %1616 = vmatpush1.msra.mxu0 0.0
    %1617 = vmatprep.subr.mxu0 0.0
    %1618 = vmatpush1.msra.mxu0 0.0
    %1619 = vmatprep.subr.mxu0 0.0
    %1620 = vmatpush1.msra.mxu0 0.0
    %1621 = vmatprep.subr.mxu0 0.0
    %1622 = vmatpush1.msra.mxu0 0.0
    %1623 = vmatprep.subr.mxu0 0.0
    %1624 = vmatpush1.msra.mxu0 0.0
    %1625 = vmatprep.subr.mxu0 0.0
    %1626 = vmatpush1.msra.mxu0 0.0
    %1627 = vmatprep.subr.mxu0 0.0
    %1628 = vmatpush1.msra.mxu0 0.0
    %1629 = vmatprep.subr.mxu0 0.0
    %1630 = vmatpush1.msra.mxu0 0.0
    %1631 = vmatprep.subr.mxu0 0.0
    %1632 = vmatpush1.msra.mxu0 0.0
    %1633 = vmatprep.subr.mxu0 0.0
    %1634 = vmatpush1.msra.mxu0 0.0
    %1635 = vmatprep.subr.mxu0 0.0
    %1636 = vmatpush1.msra.mxu0 0.0
    %1637 = vmatprep.subr.mxu0 0.0
    %1638 = vmatpush1.msra.mxu0 0.0
    %1639 = vmatprep.subr.mxu0 0.0
    %1640 = vmatpush1.msra.mxu0 0.0
    %1641 = vmatprep.subr.mxu0 0.0
    %1642 = vmatpush1.msra.mxu0 0.0
    %1643 = vmatprep.subr.mxu0 0.0
    %1644 = vmatpush1.msra.mxu0 0.0
    %1645 = vmatprep.subr.mxu0 0.0
    %1646 = vmatpush1.msra.mxu0 0.0
    %1647 = vmatprep.mubr.f32.mxu0 0.0
    %1648 = vmatmul.mubr.f32.gmra.mrb[0].mxu0 %v1572
    %v1649 = vpop.f32.mrb[0].mxu0
    %v1650 = vadd.f32 0.0, %v1649
    %v1651 = vpop.f32.mrb[0].mxu0
    %1652 = vmatprep.mubr.f32.mxu0 0.0
    %1653 = vmatmul.mubr.f32.gmra.mrb[0].mxu0 %v1575
    %v1654 = vpop.f32.mrb[0].mxu0
    %v1655 = vadd.f32 0.0, %v1654
    %v1656 = vpop.f32.mrb[0].mxu0
    %1657 = vmatprep.mubr.f32.mxu0 0.0
    %1658 = vmatmul.mubr.f32.gmra.mrb[0].mxu0 %v1578
    %v1659 = vpop.f32.mrb[0].mxu0
    %v1660 = vadd.f32 0.0, %v1659
    %v1661 = vpop.f32.mrb[0].mxu0
    %1662 = vmatprep.mubr.f32.mxu0 0.0
    %1663 = vmatmul.mubr.f32.gmra.mrb[0].mxu0 %v1581
    %v1664 = vpop.f32.mrb[0].mxu0
    %v1665 = vadd.f32 0.0, %v1664
    %v1666 = vpop.f32.mrb[0].mxu0
    %1667 = vdwg.mxu0
    %1668 = vrot.lane.b32.xlu0 %v193, 64
    %v1669 = vpop.permute.xlu0 %1668
    %1670 = vrot.lane.b32.xlu0 %v198, 64
    %v1671 = vpop.permute.xlu0 %1670
    %1672 = vrot.lane.b32.xlu0 %v203, 64
    %v1673 = vpop.permute.xlu0 %1672
    %1674 = vrot.lane.b32.xlu0 %v208, 64
    %v1675 = vpop.permute.xlu0 %1674
    %v1681 = vsel %vm81, %v1531, 0
    %v1684 = vsel %vm81, %v1532, 0
    %v1687 = vsel %vm81, %v1533, 0
    %v1690 = vsel %vm81, %v1534, 0
    %1692 = vmatprep.subr.mxu0 0.0
    %1693 = vmatpush1.msra.mxu0 %v1669
    %1694 = vmatprep.subr.mxu0 0.0
    %1695 = vmatpush1.msra.mxu0 %v1671
    %1696 = vmatprep.subr.mxu0 0.0
    %1697 = vmatpush1.msra.mxu0 %v1673
    %1698 = vmatprep.subr.mxu0 0.0
    %1699 = vmatpush1.msra.mxu0 %v1675
    %1700 = vmatprep.subr.mxu0 0.0
    %1701 = vmatpush1.msra.mxu0 0.0
    %1702 = vmatprep.subr.mxu0 0.0
    %1703 = vmatpush1.msra.mxu0 0.0
    %1704 = vmatprep.subr.mxu0 0.0
    %1705 = vmatpush1.msra.mxu0 0.0
    %1706 = vmatprep.subr.mxu0 0.0
    %1707 = vmatpush1.msra.mxu0 0.0
    %1708 = vmatprep.subr.mxu0 0.0
    %1709 = vmatpush1.msra.mxu0 0.0
    %1710 = vmatprep.subr.mxu0 0.0
    %1711 = vmatpush1.msra.mxu0 0.0
    %1712 = vmatprep.subr.mxu0 0.0
    %1713 = vmatpush1.msra.mxu0 0.0
    %1714 = vmatprep.subr.mxu0 0.0
    %1715 = vmatpush1.msra.mxu0 0.0
    %1716 = vmatprep.subr.mxu0 0.0
    %1717 = vmatpush1.msra.mxu0 0.0
    %1718 = vmatprep.subr.mxu0 0.0
    %1719 = vmatpush1.msra.mxu0 0.0
    %1720 = vmatprep.subr.mxu0 0.0
    %1721 = vmatpush1.msra.mxu0 0.0
    %1722 = vmatprep.subr.mxu0 0.0
    %1723 = vmatpush1.msra.mxu0 0.0
    %1724 = vmatprep.subr.mxu0 0.0
    %1725 = vmatpush1.msra.mxu0 0.0
    %1726 = vmatprep.subr.mxu0 0.0
    %1727 = vmatpush1.msra.mxu0 0.0
    %1728 = vmatprep.subr.mxu0 0.0
    %1729 = vmatpush1.msra.mxu0 0.0
    %1730 = vmatprep.subr.mxu0 0.0
    %1731 = vmatpush1.msra.mxu0 0.0
    %1732 = vmatprep.subr.mxu0 0.0
    %1733 = vmatpush1.msra.mxu0 0.0
    %1734 = vmatprep.subr.mxu0 0.0
    %1735 = vmatpush1.msra.mxu0 0.0
    %1736 = vmatprep.subr.mxu0 0.0
    %1737 = vmatpush1.msra.mxu0 0.0
    %1738 = vmatprep.subr.mxu0 0.0
    %1739 = vmatpush1.msra.mxu0 0.0
    %1740 = vmatprep.subr.mxu0 0.0
    %1741 = vmatpush1.msra.mxu0 0.0
    %1742 = vmatprep.subr.mxu0 0.0
    %1743 = vmatpush1.msra.mxu0 0.0
    %1744 = vmatprep.subr.mxu0 0.0
    %1745 = vmatpush1.msra.mxu0 0.0
    %1746 = vmatprep.subr.mxu0 0.0
    %1747 = vmatpush1.msra.mxu0 0.0
    %1748 = vmatprep.subr.mxu0 0.0
    %1749 = vmatpush1.msra.mxu0 0.0
    %1750 = vmatprep.subr.mxu0 0.0
    %1751 = vmatpush1.msra.mxu0 0.0
    %1752 = vmatprep.subr.mxu0 0.0
    %1753 = vmatpush1.msra.mxu0 0.0
    %1754 = vmatprep.subr.mxu0 0.0
    %1755 = vmatpush1.msra.mxu0 0.0
    %1756 = vmatprep.mubr.f32.mxu0 0.0
    %1757 = vmatmul.mubr.f32.gmra.mrb[0].mxu0 %v1681
    %v1758 = vpop.f32.mrb[0].mxu0
    %v1759 = vadd.f32 0.0, %v1758
    %v1760 = vpop.f32.mrb[0].mxu0
    %1761 = vmatprep.mubr.f32.mxu0 0.0
    %1762 = vmatmul.mubr.f32.gmra.mrb[0].mxu0 %v1684
    %v1763 = vpop.f32.mrb[0].mxu0
    %v1764 = vadd.f32 0.0, %v1763
    %v1765 = vpop.f32.mrb[0].mxu0
    %1766 = vmatprep.mubr.f32.mxu0 0.0
    %1767 = vmatmul.mubr.f32.gmra.mrb[0].mxu0 %v1687
    %v1768 = vpop.f32.mrb[0].mxu0
    %v1769 = vadd.f32 0.0, %v1768
    %v1770 = vpop.f32.mrb[0].mxu0
    %1771 = vmatprep.mubr.f32.mxu0 0.0
    %1772 = vmatmul.mubr.f32.gmra.mrb[0].mxu0 %v1690
    %v1773 = vpop.f32.mrb[0].mxu0
    %v1774 = vadd.f32 0.0, %v1773
    %v1775 = vpop.f32.mrb[0].mxu0
    %1776 = vdwg.mxu0
    %1777 = vrot.lane.b32.xlu0 %v220, 64
    %v1778 = vpop.permute.xlu0 %1777
    %1779 = vrot.lane.b32.xlu0 %v222, 64
    %v1780 = vpop.permute.xlu0 %1779
    %1781 = vrot.lane.b32.xlu0 %v224, 64
    %v1782 = vpop.permute.xlu0 %1781
    %1783 = vrot.lane.b32.xlu0 %v226, 64
    %v1784 = vpop.permute.xlu0 %1783
    %v1790 = vsel %vm81, %v1535, 0
    %v1793 = vsel %vm81, %v1536, 0
    %v1796 = vsel %vm81, %v1537, 0
    %v1799 = vsel %vm81, %v1538, 0
    %1801 = vmatprep.subr.mxu0 0.0
    %1802 = vmatpush1.msra.mxu0 %v1778
    %1803 = vmatprep.subr.mxu0 0.0
    %1804 = vmatpush1.msra.mxu0 %v1780
    %1805 = vmatprep.subr.mxu0 0.0
    %1806 = vmatpush1.msra.mxu0 %v1782
    %1807 = vmatprep.subr.mxu0 0.0
    %1808 = vmatpush1.msra.mxu0 %v1784
    %1809 = vmatprep.subr.mxu0 0.0
    %1810 = vmatpush1.msra.mxu0 0.0
    %1811 = vmatprep.subr.mxu0 0.0
    %1812 = vmatpush1.msra.mxu0 0.0
    %1813 = vmatprep.subr.mxu0 0.0
    %1814 = vmatpush1.msra.mxu0 0.0
    %1815 = vmatprep.subr.mxu0 0.0
    %1816 = vmatpush1.msra.mxu0 0.0
    %1817 = vmatprep.subr.mxu0 0.0
    %1818 = vmatpush1.msra.mxu0 0.0
    %1819 = vmatprep.subr.mxu0 0.0
    %1820 = vmatpush1.msra.mxu0 0.0
    %1821 = vmatprep.subr.mxu0 0.0
    %1822 = vmatpush1.msra.mxu0 0.0
    %1823 = vmatprep.subr.mxu0 0.0
    %1824 = vmatpush1.msra.mxu0 0.0
    %1825 = vmatprep.subr.mxu0 0.0
    %1826 = vmatpush1.msra.mxu0 0.0
    %1827 = vmatprep.subr.mxu0 0.0
    %1828 = vmatpush1.msra.mxu0 0.0
    %1829 = vmatprep.subr.mxu0 0.0
    %1830 = vmatpush1.msra.mxu0 0.0
    %1831 = vmatprep.subr.mxu0 0.0
    %1832 = vmatpush1.msra.mxu0 0.0
    %1833 = vmatprep.subr.mxu0 0.0
    %1834 = vmatpush1.msra.mxu0 0.0
    %1835 = vmatprep.subr.mxu0 0.0
    %1836 = vmatpush1.msra.mxu0 0.0
    %1837 = vmatprep.subr.mxu0 0.0
    %1838 = vmatpush1.msra.mxu0 0.0
    %1839 = vmatprep.subr.mxu0 0.0
    %1840 = vmatpush1.msra.mxu0 0.0
    %1841 = vmatprep.subr.mxu0 0.0
    %1842 = vmatpush1.msra.mxu0 0.0
    %1843 = vmatprep.subr.mxu0 0.0
    %1844 = vmatpush1.msra.mxu0 0.0
    %1845 = vmatprep.subr.mxu0 0.0
    %1846 = vmatpush1.msra.mxu0 0.0
    %1847 = vmatprep.subr.mxu0 0.0
    %1848 = vmatpush1.msra.mxu0 0.0
    %1849 = vmatprep.subr.mxu0 0.0
    %1850 = vmatpush1.msra.mxu0 0.0
    %1851 = vmatprep.subr.mxu0 0.0
    %1852 = vmatpush1.msra.mxu0 0.0
    %1853 = vmatprep.subr.mxu0 0.0
    %1854 = vmatpush1.msra.mxu0 0.0
    %1855 = vmatprep.subr.mxu0 0.0
    %1856 = vmatpush1.msra.mxu0 0.0
    %1857 = vmatprep.subr.mxu0 0.0
    %1858 = vmatpush1.msra.mxu0 0.0
    %1859 = vmatprep.subr.mxu0 0.0
    %1860 = vmatpush1.msra.mxu0 0.0
    %1861 = vmatprep.subr.mxu0 0.0
    %1862 = vmatpush1.msra.mxu0 0.0
    %1863 = vmatprep.subr.mxu0 0.0
    %1864 = vmatpush1.msra.mxu0 0.0
    %1865 = vmatprep.mubr.f32.mxu0 0.0
    %1866 = vmatmul.mubr.f32.gmra.mrb[0].mxu0 %v1790
    %v1867 = vpop.f32.mrb[0].mxu0
    %v1868 = vadd.f32 0.0, %v1867
    %v1869 = vpop.f32.mrb[0].mxu0
    %1870 = vmatprep.mubr.f32.mxu0 0.0
    %1871 = vmatmul.mubr.f32.gmra.mrb[0].mxu0 %v1793
    %v1872 = vpop.f32.mrb[0].mxu0
    %v1873 = vadd.f32 0.0, %v1872
    %v1874 = vpop.f32.mrb[0].mxu0
    %1875 = vmatprep.mubr.f32.mxu0 0.0
    %1876 = vmatmul.mubr.f32.gmra.mrb[0].mxu0 %v1796
    %v1877 = vpop.f32.mrb[0].mxu0
    %v1878 = vadd.f32 0.0, %v1877
    %v1879 = vpop.f32.mrb[0].mxu0
    %1880 = vmatprep.mubr.f32.mxu0 0.0
    %1881 = vmatmul.mubr.f32.gmra.mrb[0].mxu0 %v1799
    %v1882 = vpop.f32.mrb[0].mxu0
    %v1883 = vadd.f32 0.0, %v1882
    %v1884 = vpop.f32.mrb[0].mxu0
    %1885 = vdwg.mxu0
    %1886 = vrot.lane.b32.xlu0 %v228, 64
    %v1887 = vpop.permute.xlu0 %1886
    %1888 = vrot.lane.b32.xlu0 %v230, 64
    %v1889 = vpop.permute.xlu0 %1888
    %1890 = vrot.lane.b32.xlu0 %v232, 64
    %v1891 = vpop.permute.xlu0 %1890
    %1892 = vrot.lane.b32.xlu0 %v234, 64
    %v1893 = vpop.permute.xlu0 %1892
    %v1899 = vsel %vm81, %v1539, 0
    %v1902 = vsel %vm81, %v1540, 0
    %v1905 = vsel %vm81, %v1541, 0
    %v1908 = vsel %vm81, %v1542, 0
    %1910 = vmatprep.subr.mxu0 0.0
    %1911 = vmatpush1.msra.mxu0 %v1887
    %1912 = vmatprep.subr.mxu0 0.0
    %1913 = vmatpush1.msra.mxu0 %v1889
    %1914 = vmatprep.subr.mxu0 0.0
    %1915 = vmatpush1.msra.mxu0 %v1891
    %1916 = vmatprep.subr.mxu0 0.0
    %1917 = vmatpush1.msra.mxu0 %v1893
    %1918 = vmatprep.subr.mxu0 0.0
    %1919 = vmatpush1.msra.mxu0 0.0
    %1920 = vmatprep.subr.mxu0 0.0
    %1921 = vmatpush1.msra.mxu0 0.0
    %1922 = vmatprep.subr.mxu0 0.0
    %1923 = vmatpush1.msra.mxu0 0.0
    %1924 = vmatprep.subr.mxu0 0.0
    %1925 = vmatpush1.msra.mxu0 0.0
    %1926 = vmatprep.subr.mxu0 0.0
    %1927 = vmatpush1.msra.mxu0 0.0
    %1928 = vmatprep.subr.mxu0 0.0
    %1929 = vmatpush1.msra.mxu0 0.0
    %1930 = vmatprep.subr.mxu0 0.0
    %1931 = vmatpush1.msra.mxu0 0.0
    %1932 = vmatprep.subr.mxu0 0.0
    %1933 = vmatpush1.msra.mxu0 0.0
    %1934 = vmatprep.subr.mxu0 0.0
    %1935 = vmatpush1.msra.mxu0 0.0
    %1936 = vmatprep.subr.mxu0 0.0
    %1937 = vmatpush1.msra.mxu0 0.0
    %1938 = vmatprep.subr.mxu0 0.0
    %1939 = vmatpush1.msra.mxu0 0.0
    %1940 = vmatprep.subr.mxu0 0.0
    %1941 = vmatpush1.msra.mxu0 0.0
    %1942 = vmatprep.subr.mxu0 0.0
    %1943 = vmatpush1.msra.mxu0 0.0
    %1944 = vmatprep.subr.mxu0 0.0
    %1945 = vmatpush1.msra.mxu0 0.0
    %1946 = vmatprep.subr.mxu0 0.0
    %1947 = vmatpush1.msra.mxu0 0.0
    %1948 = vmatprep.subr.mxu0 0.0
    %1949 = vmatpush1.msra.mxu0 0.0
    %1950 = vmatprep.subr.mxu0 0.0
    %1951 = vmatpush1.msra.mxu0 0.0
    %1952 = vmatprep.subr.mxu0 0.0
    %1953 = vmatpush1.msra.mxu0 0.0
    %1954 = vmatprep.subr.mxu0 0.0
    %1955 = vmatpush1.msra.mxu0 0.0
    %1956 = vmatprep.subr.mxu0 0.0
    %1957 = vmatpush1.msra.mxu0 0.0
    %1958 = vmatprep.subr.mxu0 0.0
    %1959 = vmatpush1.msra.mxu0 0.0
    %1960 = vmatprep.subr.mxu0 0.0
    %1961 = vmatpush1.msra.mxu0 0.0
    %1962 = vmatprep.subr.mxu0 0.0
    %1963 = vmatpush1.msra.mxu0 0.0
    %1964 = vmatprep.subr.mxu0 0.0
    %1965 = vmatpush1.msra.mxu0 0.0
    %1966 = vmatprep.subr.mxu0 0.0
    %1967 = vmatpush1.msra.mxu0 0.0
    %1968 = vmatprep.subr.mxu0 0.0
    %1969 = vmatpush1.msra.mxu0 0.0
    %1970 = vmatprep.subr.mxu0 0.0
    %1971 = vmatpush1.msra.mxu0 0.0
    %1972 = vmatprep.subr.mxu0 0.0
    %1973 = vmatpush1.msra.mxu0 0.0
    %1974 = vmatprep.mubr.f32.mxu0 0.0
    %1975 = vmatmul.mubr.f32.gmra.mrb[0].mxu0 %v1899
    %v1976 = vpop.f32.mrb[0].mxu0
    %v1977 = vadd.f32 0.0, %v1976
    %v1978 = vpop.f32.mrb[0].mxu0
    %1979 = vmatprep.mubr.f32.mxu0 0.0
    %1980 = vmatmul.mubr.f32.gmra.mrb[0].mxu0 %v1902
    %v1981 = vpop.f32.mrb[0].mxu0
    %v1982 = vadd.f32 0.0, %v1981
    %v1983 = vpop.f32.mrb[0].mxu0
    %1984 = vmatprep.mubr.f32.mxu0 0.0
    %1985 = vmatmul.mubr.f32.gmra.mrb[0].mxu0 %v1905
    %v1986 = vpop.f32.mrb[0].mxu0
    %v1987 = vadd.f32 0.0, %v1986
    %v1988 = vpop.f32.mrb[0].mxu0
    %1989 = vmatprep.mubr.f32.mxu0 0.0
    %1990 = vmatmul.mubr.f32.gmra.mrb[0].mxu0 %v1908
    %v1991 = vpop.f32.mrb[0].mxu0
    %v1992 = vadd.f32 0.0, %v1991
    %v1993 = vpop.f32.mrb[0].mxu0
    %1994 = vdwg.mxu0
    %1995 = vrot.lane.b32.xlu0 %v236, 64
    %v1996 = vpop.permute.xlu0 %1995
    %1997 = vrot.lane.b32.xlu0 %v238, 64
    %v1998 = vpop.permute.xlu0 %1997
    %1999 = vrot.lane.b32.xlu0 %v240, 64
    %v2000 = vpop.permute.xlu0 %1999
    %2001 = vrot.lane.b32.xlu0 %v242, 64
    %v2002 = vpop.permute.xlu0 %2001
    %v2008 = vsel %vm81, %v1543, 0
    %v2011 = vsel %vm81, %v1544, 0
    %v2014 = vsel %vm81, %v1545, 0
    %v2017 = vsel %vm81, %v1546, 0
    %2019 = vmatprep.subr.mxu0 0.0
    %2020 = vmatpush1.msra.mxu0 %v1996
    %2021 = vmatprep.subr.mxu0 0.0
    %2022 = vmatpush1.msra.mxu0 %v1998
    %2023 = vmatprep.subr.mxu0 0.0
    %2024 = vmatpush1.msra.mxu0 %v2000
    %2025 = vmatprep.subr.mxu0 0.0
    %2026 = vmatpush1.msra.mxu0 %v2002
    %2027 = vmatprep.subr.mxu0 0.0
    %2028 = vmatpush1.msra.mxu0 0.0
    %2029 = vmatprep.subr.mxu0 0.0
    %2030 = vmatpush1.msra.mxu0 0.0
    %2031 = vmatprep.subr.mxu0 0.0
    %2032 = vmatpush1.msra.mxu0 0.0
    %2033 = vmatprep.subr.mxu0 0.0
    %2034 = vmatpush1.msra.mxu0 0.0
    %2035 = vmatprep.subr.mxu0 0.0
    %2036 = vmatpush1.msra.mxu0 0.0
    %2037 = vmatprep.subr.mxu0 0.0
    %2038 = vmatpush1.msra.mxu0 0.0
    %2039 = vmatprep.subr.mxu0 0.0
    %2040 = vmatpush1.msra.mxu0 0.0
    %2041 = vmatprep.subr.mxu0 0.0
    %2042 = vmatpush1.msra.mxu0 0.0
    %2043 = vmatprep.subr.mxu0 0.0
    %2044 = vmatpush1.msra.mxu0 0.0
    %2045 = vmatprep.subr.mxu0 0.0
    %2046 = vmatpush1.msra.mxu0 0.0
    %2047 = vmatprep.subr.mxu0 0.0
    %2048 = vmatpush1.msra.mxu0 0.0
    %2049 = vmatprep.subr.mxu0 0.0
    %2050 = vmatpush1.msra.mxu0 0.0
    %2051 = vmatprep.subr.mxu0 0.0
    %2052 = vmatpush1.msra.mxu0 0.0
    %2053 = vmatprep.subr.mxu0 0.0
    %2054 = vmatpush1.msra.mxu0 0.0
    %2055 = vmatprep.subr.mxu0 0.0
    %2056 = vmatpush1.msra.mxu0 0.0
    %2057 = vmatprep.subr.mxu0 0.0
    %2058 = vmatpush1.msra.mxu0 0.0
    %2059 = vmatprep.subr.mxu0 0.0
    %2060 = vmatpush1.msra.mxu0 0.0
    %2061 = vmatprep.subr.mxu0 0.0
    %2062 = vmatpush1.msra.mxu0 0.0
    %2063 = vmatprep.subr.mxu0 0.0
    %2064 = vmatpush1.msra.mxu0 0.0
    %2065 = vmatprep.subr.mxu0 0.0
    %2066 = vmatpush1.msra.mxu0 0.0
    %2067 = vmatprep.subr.mxu0 0.0
    %2068 = vmatpush1.msra.mxu0 0.0
    %2069 = vmatprep.subr.mxu0 0.0
    %2070 = vmatpush1.msra.mxu0 0.0
    %2071 = vmatprep.subr.mxu0 0.0
    %2072 = vmatpush1.msra.mxu0 0.0
    %2073 = vmatprep.subr.mxu0 0.0
    %2074 = vmatpush1.msra.mxu0 0.0
    %2075 = vmatprep.subr.mxu0 0.0
    %2076 = vmatpush1.msra.mxu0 0.0
    %2077 = vmatprep.subr.mxu0 0.0
    %2078 = vmatpush1.msra.mxu0 0.0
    %2079 = vmatprep.subr.mxu0 0.0
    %2080 = vmatpush1.msra.mxu0 0.0
    %2081 = vmatprep.subr.mxu0 0.0
    %2082 = vmatpush1.msra.mxu0 0.0
    %2083 = vmatprep.mubr.f32.mxu0 0.0
    %2084 = vmatmul.mubr.f32.gmra.mrb[0].mxu0 %v2008
    %v2085 = vpop.f32.mrb[0].mxu0
    %v2086 = vadd.f32 0.0, %v2085
    %v2087 = vpop.f32.mrb[0].mxu0
    %2088 = vmatprep.mubr.f32.mxu0 0.0
    %2089 = vmatmul.mubr.f32.gmra.mrb[0].mxu0 %v2011
    %v2090 = vpop.f32.mrb[0].mxu0
    %v2091 = vadd.f32 0.0, %v2090
    %v2092 = vpop.f32.mrb[0].mxu0
    %2093 = vmatprep.mubr.f32.mxu0 0.0
    %2094 = vmatmul.mubr.f32.gmra.mrb[0].mxu0 %v2014
    %v2095 = vpop.f32.mrb[0].mxu0
    %v2096 = vadd.f32 0.0, %v2095
    %v2097 = vpop.f32.mrb[0].mxu0
    %2098 = vmatprep.mubr.f32.mxu0 0.0
    %2099 = vmatmul.mubr.f32.gmra.mrb[0].mxu0 %v2017
    %v2100 = vpop.f32.mrb[0].mxu0
    %v2101 = vadd.f32 0.0, %v2100
    %v2102 = vpop.f32.mrb[0].mxu0
    %2103 = vdwg.mxu0
    %2104 = vrot.lane.b32.xlu0 %v244, 64
    %v2105 = vpop.permute.xlu0 %2104
    %2106 = vrot.lane.b32.xlu0 %v246, 64
    %v2107 = vpop.permute.xlu0 %2106
    %2108 = vrot.lane.b32.xlu0 %v248, 64
    %v2109 = vpop.permute.xlu0 %2108
    %2110 = vrot.lane.b32.xlu0 %v250, 64
    %v2111 = vpop.permute.xlu0 %2110
    %v2117 = vsel %vm81, %v1547, 0
    %v2120 = vsel %vm81, %v1548, 0
    %v2123 = vsel %vm81, %v1549, 0
    %v2126 = vsel %vm81, %v1550, 0
    %2128 = vmatprep.subr.mxu0 0.0
    %2129 = vmatpush1.msra.mxu0 %v2105
    %2130 = vmatprep.subr.mxu0 0.0
    %2131 = vmatpush1.msra.mxu0 %v2107
    %2132 = vmatprep.subr.mxu0 0.0
    %2133 = vmatpush1.msra.mxu0 %v2109
    %2134 = vmatprep.subr.mxu0 0.0
    %2135 = vmatpush1.msra.mxu0 %v2111
    %2136 = vmatprep.subr.mxu0 0.0
    %2137 = vmatpush1.msra.mxu0 0.0
    %2138 = vmatprep.subr.mxu0 0.0
    %2139 = vmatpush1.msra.mxu0 0.0
    %2140 = vmatprep.subr.mxu0 0.0
    %2141 = vmatpush1.msra.mxu0 0.0
    %2142 = vmatprep.subr.mxu0 0.0
    %2143 = vmatpush1.msra.mxu0 0.0
    %2144 = vmatprep.subr.mxu0 0.0
    %2145 = vmatpush1.msra.mxu0 0.0
    %2146 = vmatprep.subr.mxu0 0.0
    %2147 = vmatpush1.msra.mxu0 0.0
    %2148 = vmatprep.subr.mxu0 0.0
    %2149 = vmatpush1.msra.mxu0 0.0
    %2150 = vmatprep.subr.mxu0 0.0
    %2151 = vmatpush1.msra.mxu0 0.0
    %2152 = vmatprep.subr.mxu0 0.0
    %2153 = vmatpush1.msra.mxu0 0.0
    %2154 = vmatprep.subr.mxu0 0.0
    %2155 = vmatpush1.msra.mxu0 0.0
    %2156 = vmatprep.subr.mxu0 0.0
    %2157 = vmatpush1.msra.mxu0 0.0
    %2158 = vmatprep.subr.mxu0 0.0
    %2159 = vmatpush1.msra.mxu0 0.0
    %2160 = vmatprep.subr.mxu0 0.0
    %2161 = vmatpush1.msra.mxu0 0.0
    %2162 = vmatprep.subr.mxu0 0.0
    %2163 = vmatpush1.msra.mxu0 0.0
    %2164 = vmatprep.subr.mxu0 0.0
    %2165 = vmatpush1.msra.mxu0 0.0
    %2166 = vmatprep.subr.mxu0 0.0
    %2167 = vmatpush1.msra.mxu0 0.0
    %2168 = vmatprep.subr.mxu0 0.0
    %2169 = vmatpush1.msra.mxu0 0.0
    %2170 = vmatprep.subr.mxu0 0.0
    %2171 = vmatpush1.msra.mxu0 0.0
    %2172 = vmatprep.subr.mxu0 0.0
    %2173 = vmatpush1.msra.mxu0 0.0
    %2174 = vmatprep.subr.mxu0 0.0
    %2175 = vmatpush1.msra.mxu0 0.0
    %2176 = vmatprep.subr.mxu0 0.0
    %2177 = vmatpush1.msra.mxu0 0.0
    %2178 = vmatprep.subr.mxu0 0.0
    %2179 = vmatpush1.msra.mxu0 0.0
    %2180 = vmatprep.subr.mxu0 0.0
    %2181 = vmatpush1.msra.mxu0 0.0
    %2182 = vmatprep.subr.mxu0 0.0
    %2183 = vmatpush1.msra.mxu0 0.0
    %2184 = vmatprep.subr.mxu0 0.0
    %2185 = vmatpush1.msra.mxu0 0.0
    %2186 = vmatprep.subr.mxu0 0.0
    %2187 = vmatpush1.msra.mxu0 0.0
    %2188 = vmatprep.subr.mxu0 0.0
    %2189 = vmatpush1.msra.mxu0 0.0
    %2190 = vmatprep.subr.mxu0 0.0
    %2191 = vmatpush1.msra.mxu0 0.0
    %2192 = vmatprep.mubr.f32.mxu0 0.0
    %2193 = vmatmul.mubr.f32.gmra.mrb[0].mxu0 %v2117
    %v2194 = vpop.f32.mrb[0].mxu0
    %v2195 = vadd.f32 0.0, %v2194
    %v2196 = vpop.f32.mrb[0].mxu0
    %2197 = vmatprep.mubr.f32.mxu0 0.0
    %2198 = vmatmul.mubr.f32.gmra.mrb[0].mxu0 %v2120
    %v2199 = vpop.f32.mrb[0].mxu0
    %v2200 = vadd.f32 0.0, %v2199
    %v2201 = vpop.f32.mrb[0].mxu0
    %2202 = vmatprep.mubr.f32.mxu0 0.0
    %2203 = vmatmul.mubr.f32.gmra.mrb[0].mxu0 %v2123
    %v2204 = vpop.f32.mrb[0].mxu0
    %v2205 = vadd.f32 0.0, %v2204
    %v2206 = vpop.f32.mrb[0].mxu0
    %2207 = vmatprep.mubr.f32.mxu0 0.0
    %2208 = vmatmul.mubr.f32.gmra.mrb[0].mxu0 %v2126
    %v2209 = vpop.f32.mrb[0].mxu0
    %v2210 = vadd.f32 0.0, %v2209
    %v2211 = vpop.f32.mrb[0].mxu0
    %2212 = vdwg.mxu0
    %2213 = vrot.lane.b32.xlu0 %v252, 64
    %v2214 = vpop.permute.xlu0 %2213
    %2215 = vrot.lane.b32.xlu0 %v254, 64
    %v2216 = vpop.permute.xlu0 %2215
    %2217 = vrot.lane.b32.xlu0 %v256, 64
    %v2218 = vpop.permute.xlu0 %2217
    %2219 = vrot.lane.b32.xlu0 %v258, 64
    %v2220 = vpop.permute.xlu0 %2219
    %v2226 = vsel %vm81, %v1551, 0
    %v2229 = vsel %vm81, %v1552, 0
    %v2232 = vsel %vm81, %v1553, 0
    %v2235 = vsel %vm81, %v1554, 0
    %2237 = vmatprep.subr.mxu0 0.0
    %2238 = vmatpush1.msra.mxu0 %v2214
    %2239 = vmatprep.subr.mxu0 0.0
    %2240 = vmatpush1.msra.mxu0 %v2216
    %2241 = vmatprep.subr.mxu0 0.0
    %2242 = vmatpush1.msra.mxu0 %v2218
    %2243 = vmatprep.subr.mxu0 0.0
    %2244 = vmatpush1.msra.mxu0 %v2220
    %2245 = vmatprep.subr.mxu0 0.0
    %2246 = vmatpush1.msra.mxu0 0.0
    %2247 = vmatprep.subr.mxu0 0.0
    %2248 = vmatpush1.msra.mxu0 0.0
    %2249 = vmatprep.subr.mxu0 0.0
    %2250 = vmatpush1.msra.mxu0 0.0
    %2251 = vmatprep.subr.mxu0 0.0
    %2252 = vmatpush1.msra.mxu0 0.0
    %2253 = vmatprep.subr.mxu0 0.0
    %2254 = vmatpush1.msra.mxu0 0.0
    %2255 = vmatprep.subr.mxu0 0.0
    %2256 = vmatpush1.msra.mxu0 0.0
    %2257 = vmatprep.subr.mxu0 0.0
    %2258 = vmatpush1.msra.mxu0 0.0
    %2259 = vmatprep.subr.mxu0 0.0
    %2260 = vmatpush1.msra.mxu0 0.0
    %2261 = vmatprep.subr.mxu0 0.0
    %2262 = vmatpush1.msra.mxu0 0.0
    %2263 = vmatprep.subr.mxu0 0.0
    %2264 = vmatpush1.msra.mxu0 0.0
    %2265 = vmatprep.subr.mxu0 0.0
    %2266 = vmatpush1.msra.mxu0 0.0
    %2267 = vmatprep.subr.mxu0 0.0
    %2268 = vmatpush1.msra.mxu0 0.0
    %2269 = vmatprep.subr.mxu0 0.0
    %2270 = vmatpush1.msra.mxu0 0.0
    %2271 = vmatprep.subr.mxu0 0.0
    %2272 = vmatpush1.msra.mxu0 0.0
    %2273 = vmatprep.subr.mxu0 0.0
    %2274 = vmatpush1.msra.mxu0 0.0
    %2275 = vmatprep.subr.mxu0 0.0
    %2276 = vmatpush1.msra.mxu0 0.0
    %2277 = vmatprep.subr.mxu0 0.0
    %2278 = vmatpush1.msra.mxu0 0.0
    %2279 = vmatprep.subr.mxu0 0.0
    %2280 = vmatpush1.msra.mxu0 0.0
    %2281 = vmatprep.subr.mxu0 0.0
    %2282 = vmatpush1.msra.mxu0 0.0
    %2283 = vmatprep.subr.mxu0 0.0
    %2284 = vmatpush1.msra.mxu0 0.0
    %2285 = vmatprep.subr.mxu0 0.0
    %2286 = vmatpush1.msra.mxu0 0.0
    %2287 = vmatprep.subr.mxu0 0.0
    %2288 = vmatpush1.msra.mxu0 0.0
    %2289 = vmatprep.subr.mxu0 0.0
    %2290 = vmatpush1.msra.mxu0 0.0
    %2291 = vmatprep.subr.mxu0 0.0
    %2292 = vmatpush1.msra.mxu0 0.0
    %2293 = vmatprep.subr.mxu0 0.0
    %2294 = vmatpush1.msra.mxu0 0.0
    %2295 = vmatprep.subr.mxu0 0.0
    %2296 = vmatpush1.msra.mxu0 0.0
    %2297 = vmatprep.subr.mxu0 0.0
    %2298 = vmatpush1.msra.mxu0 0.0
    %2299 = vmatprep.subr.mxu0 0.0
    %2300 = vmatpush1.msra.mxu0 0.0
    %2301 = vmatprep.mubr.f32.mxu0 0.0
    %2302 = vmatmul.mubr.f32.gmra.mrb[0].mxu0 %v2226
    %v2303 = vpop.f32.mrb[0].mxu0
    %v2304 = vadd.f32 0.0, %v2303
    %v2305 = vpop.f32.mrb[0].mxu0
    %2306 = vmatprep.mubr.f32.mxu0 0.0
    %2307 = vmatmul.mubr.f32.gmra.mrb[0].mxu0 %v2229
    %v2308 = vpop.f32.mrb[0].mxu0
    %v2309 = vadd.f32 0.0, %v2308
    %v2310 = vpop.f32.mrb[0].mxu0
    %2311 = vmatprep.mubr.f32.mxu0 0.0
    %2312 = vmatmul.mubr.f32.gmra.mrb[0].mxu0 %v2232
    %v2313 = vpop.f32.mrb[0].mxu0
    %v2314 = vadd.f32 0.0, %v2313
    %v2315 = vpop.f32.mrb[0].mxu0
    %2316 = vmatprep.mubr.f32.mxu0 0.0
    %2317 = vmatmul.mubr.f32.gmra.mrb[0].mxu0 %v2235
    %v2318 = vpop.f32.mrb[0].mxu0
    %v2319 = vadd.f32 0.0, %v2318
    %v2320 = vpop.f32.mrb[0].mxu0
    %2321 = vdwg.mxu0
    %2322 = vrot.lane.b32.xlu0 %v260, 64
    %v2323 = vpop.permute.xlu0 %2322
    %2324 = vrot.lane.b32.xlu0 %v262, 64
    %v2325 = vpop.permute.xlu0 %2324
    %2326 = vrot.lane.b32.xlu0 %v264, 64
    %v2327 = vpop.permute.xlu0 %2326
    %2328 = vrot.lane.b32.xlu0 %v266, 64
    %v2329 = vpop.permute.xlu0 %2328
    %v2335 = vsel %vm81, %v1555, 0
    %v2338 = vsel %vm81, %v1556, 0
    %v2341 = vsel %vm81, %v1557, 0
    %v2344 = vsel %vm81, %v1558, 0
    %2346 = vmatprep.subr.mxu0 0.0
    %2347 = vmatpush1.msra.mxu0 %v2323
    %2348 = vmatprep.subr.mxu0 0.0
    %2349 = vmatpush1.msra.mxu0 %v2325
    %2350 = vmatprep.subr.mxu0 0.0
    %2351 = vmatpush1.msra.mxu0 %v2327
    %2352 = vmatprep.subr.mxu0 0.0
    %2353 = vmatpush1.msra.mxu0 %v2329
    %2354 = vmatprep.subr.mxu0 0.0
    %2355 = vmatpush1.msra.mxu0 0.0
    %2356 = vmatprep.subr.mxu0 0.0
    %2357 = vmatpush1.msra.mxu0 0.0
    %2358 = vmatprep.subr.mxu0 0.0
    %2359 = vmatpush1.msra.mxu0 0.0
    %2360 = vmatprep.subr.mxu0 0.0
    %2361 = vmatpush1.msra.mxu0 0.0
    %2362 = vmatprep.subr.mxu0 0.0
    %2363 = vmatpush1.msra.mxu0 0.0
    %2364 = vmatprep.subr.mxu0 0.0
    %2365 = vmatpush1.msra.mxu0 0.0
    %2366 = vmatprep.subr.mxu0 0.0
    %2367 = vmatpush1.msra.mxu0 0.0
    %2368 = vmatprep.subr.mxu0 0.0
    %2369 = vmatpush1.msra.mxu0 0.0
    %2370 = vmatprep.subr.mxu0 0.0
    %2371 = vmatpush1.msra.mxu0 0.0
    %2372 = vmatprep.subr.mxu0 0.0
    %2373 = vmatpush1.msra.mxu0 0.0
    %2374 = vmatprep.subr.mxu0 0.0
    %2375 = vmatpush1.msra.mxu0 0.0
    %2376 = vmatprep.subr.mxu0 0.0
    %2377 = vmatpush1.msra.mxu0 0.0
    %2378 = vmatprep.subr.mxu0 0.0
    %2379 = vmatpush1.msra.mxu0 0.0
    %2380 = vmatprep.subr.mxu0 0.0
    %2381 = vmatpush1.msra.mxu0 0.0
    %2382 = vmatprep.subr.mxu0 0.0
    %2383 = vmatpush1.msra.mxu0 0.0
    %2384 = vmatprep.subr.mxu0 0.0
    %2385 = vmatpush1.msra.mxu0 0.0
    %2386 = vmatprep.subr.mxu0 0.0
    %2387 = vmatpush1.msra.mxu0 0.0
    %2388 = vmatprep.subr.mxu0 0.0
    %2389 = vmatpush1.msra.mxu0 0.0
    %2390 = vmatprep.subr.mxu0 0.0
    %2391 = vmatpush1.msra.mxu0 0.0
    %2392 = vmatprep.subr.mxu0 0.0
    %2393 = vmatpush1.msra.mxu0 0.0
    %2394 = vmatprep.subr.mxu0 0.0
    %2395 = vmatpush1.msra.mxu0 0.0
    %2396 = vmatprep.subr.mxu0 0.0
    %2397 = vmatpush1.msra.mxu0 0.0
    %2398 = vmatprep.subr.mxu0 0.0
    %2399 = vmatpush1.msra.mxu0 0.0
    %2400 = vmatprep.subr.mxu0 0.0
    %2401 = vmatpush1.msra.mxu0 0.0
    %2402 = vmatprep.subr.mxu0 0.0
    %2403 = vmatpush1.msra.mxu0 0.0
    %2404 = vmatprep.subr.mxu0 0.0
    %2405 = vmatpush1.msra.mxu0 0.0
    %2406 = vmatprep.subr.mxu0 0.0
    %2407 = vmatpush1.msra.mxu0 0.0
    %2408 = vmatprep.subr.mxu0 0.0
    %2409 = vmatpush1.msra.mxu0 0.0
    %2410 = vmatprep.mubr.f32.mxu0 0.0
    %2411 = vmatmul.mubr.f32.gmra.mrb[0].mxu0 %v2335
    %v2412 = vpop.f32.mrb[0].mxu0
    %v2413 = vadd.f32 0.0, %v2412
    %v2414 = vpop.f32.mrb[0].mxu0
    %2415 = vmatprep.mubr.f32.mxu0 0.0
    %2416 = vmatmul.mubr.f32.gmra.mrb[0].mxu0 %v2338
    %v2417 = vpop.f32.mrb[0].mxu0
    %v2418 = vadd.f32 0.0, %v2417
    %v2419 = vpop.f32.mrb[0].mxu0
    %2420 = vmatprep.mubr.f32.mxu0 0.0
    %2421 = vmatmul.mubr.f32.gmra.mrb[0].mxu0 %v2341
    %v2422 = vpop.f32.mrb[0].mxu0
    %v2423 = vadd.f32 0.0, %v2422
    %v2424 = vpop.f32.mrb[0].mxu0
    %2425 = vmatprep.mubr.f32.mxu0 0.0
    %2426 = vmatmul.mubr.f32.gmra.mrb[0].mxu0 %v2344
    %v2427 = vpop.f32.mrb[0].mxu0
    %v2428 = vadd.f32 0.0, %v2427
    %v2429 = vpop.f32.mrb[0].mxu0
    %2430 = vdwg.mxu0
    %2439 = vrot.lane.b32.xlu0 %v1868, 8
    %v2440 = vpop.permute.xlu0 %2439
    %2441 = vrot.lane.b32.xlu0 %v1873, 8
    %v2442 = vpop.permute.xlu0 %2441
    %2443 = vrot.lane.b32.xlu0 %v1878, 8
    %v2444 = vpop.permute.xlu0 %2443
    %2445 = vrot.lane.b32.xlu0 %v1883, 8
    %v2446 = vpop.permute.xlu0 %2445
    %2447 = vrot.lane.b32.xlu0 %v1977, 8
    %v2448 = vpop.permute.xlu0 %2447
    %2449 = vrot.lane.b32.xlu0 %v1982, 8
    %v2450 = vpop.permute.xlu0 %2449
    %2451 = vrot.lane.b32.xlu0 %v1987, 8
    %v2452 = vpop.permute.xlu0 %2451
    %2453 = vrot.lane.b32.xlu0 %v1992, 8
    %v2454 = vpop.permute.xlu0 %2453
    %2471 = vrot.lane.b32.xlu0 %v2086, 16
    %v2472 = vpop.permute.xlu0 %2471
    %2473 = vrot.lane.b32.xlu0 %v2091, 16
    %v2474 = vpop.permute.xlu0 %2473
    %2475 = vrot.lane.b32.xlu0 %v2096, 16
    %v2476 = vpop.permute.xlu0 %2475
    %2477 = vrot.lane.b32.xlu0 %v2101, 16
    %v2478 = vpop.permute.xlu0 %2477
    %2479 = vrot.lane.b32.xlu0 %v2195, 16
    %v2480 = vpop.permute.xlu0 %2479
    %2481 = vrot.lane.b32.xlu0 %v2200, 16
    %v2482 = vpop.permute.xlu0 %2481
    %2483 = vrot.lane.b32.xlu0 %v2205, 16
    %v2484 = vpop.permute.xlu0 %2483
    %2485 = vrot.lane.b32.xlu0 %v2210, 16
    %v2486 = vpop.permute.xlu0 %2485
    %2503 = vrot.lane.b32.xlu0 %v2304, 24
    %v2504 = vpop.permute.xlu0 %2503
    %2505 = vrot.lane.b32.xlu0 %v2309, 24
    %v2506 = vpop.permute.xlu0 %2505
    %2507 = vrot.lane.b32.xlu0 %v2314, 24
    %v2508 = vpop.permute.xlu0 %2507
    %2509 = vrot.lane.b32.xlu0 %v2319, 24
    %v2510 = vpop.permute.xlu0 %2509
    %2511 = vrot.lane.b32.xlu0 %v2413, 24
    %v2512 = vpop.permute.xlu0 %2511
    %2513 = vrot.lane.b32.xlu0 %v2418, 24
    %v2514 = vpop.permute.xlu0 %2513
    %2515 = vrot.lane.b32.xlu0 %v2423, 24
    %v2516 = vpop.permute.xlu0 %2515
    %2517 = vrot.lane.b32.xlu0 %v2428, 24
    %v2518 = vpop.permute.xlu0 %2517
    %v2527 = vsel %vm275, %v1650, %v2440
    %v2528 = vsel %vm275, %v1655, %v2442
    %v2529 = vsel %vm275, %v1660, %v2444
    %v2530 = vsel %vm275, %v1665, %v2446
    %v2531 = vsel %vm275, %v1759, %v2448
    %v2532 = vsel %vm275, %v1764, %v2450
    %v2533 = vsel %vm275, %v1769, %v2452
    %v2534 = vsel %vm275, %v1774, %v2454
    %vm2535 = vcmask 130048
    %v2536 = vsel %vm2535, %v2527, %v2472
    %v2537 = vsel %vm2535, %v2528, %v2474
    %v2538 = vsel %vm2535, %v2529, %v2476
    %v2539 = vsel %vm2535, %v2530, %v2478
    %v2540 = vsel %vm2535, %v2531, %v2480
    %v2541 = vsel %vm2535, %v2532, %v2482
    %v2542 = vsel %vm2535, %v2533, %v2484
    %v2543 = vsel %vm2535, %v2534, %v2486
    %vm2544 = vcmask 195584
    %v2545 = vsel %vm2544, %v2536, %v2504
    %v2546 = vsel %vm2544, %v2537, %v2506
    %v2547 = vsel %vm2544, %v2538, %v2508
    %v2548 = vsel %vm2544, %v2539, %v2510
    %v2549 = vsel %vm2544, %v2540, %v2512
    %v2550 = vsel %vm2544, %v2541, %v2514
    %v2551 = vsel %vm2544, %v2542, %v2516
    %v2552 = vsel %vm2544, %v2543, %v2518
    %v2553 = vld [vmem:[#allocation7] sm:$0xff]
    %v2554 = vld [vmem:[#allocation7 + $0x8] sm:$0xff]
    %v2555 = vld [vmem:[#allocation7 + $0x10] sm:$0xff]
    %v2556 = vld [vmem:[#allocation7 + $0x18] sm:$0xff]
    %v2557 = vld [vmem:[%s4] sm:$0x1]
    %v2559 = vlaneseq
    %v2560 = vshrl.u32 %v2559, 7
    %v2561 = vsub.s32 0, %v2560
    %v2562 = vrot.slane %v2557, %v2561
    %v2565 = vsel %vm81, %v2545, 0
    %v2568 = vsel %vm81, %v2546, 0
    %v2571 = vsel %vm81, %v2547, 0
    %v2574 = vsel %vm81, %v2548, 0
    %v2577 = vsel %vm81, %v2549, 0
    %v2580 = vsel %vm81, %v2550, 0
    %v2583 = vsel %vm81, %v2551, 0
    %v2586 = vsel %vm81, %v2552, 0
    %2588 = vmatprep.subr.mxu0 0.0
    %2589 = vmatpush1.msra.mxu0 %v2553
    %2590 = vmatprep.subr.mxu0 0.0
    %2591 = vmatpush1.msra.mxu0 %v2554
    %2592 = vmatprep.subr.mxu0 0.0
    %2593 = vmatpush1.msra.mxu0 %v2555
    %2594 = vmatprep.subr.mxu0 0.0
    %2595 = vmatpush1.msra.mxu0 %v2556
    %2596 = vmatprep.subr.mxu0 0.0
    %2597 = vmatpush1.msra.mxu0 0.0
    %2598 = vmatprep.subr.mxu0 0.0
    %2599 = vmatpush1.msra.mxu0 0.0
    %2600 = vmatprep.subr.mxu0 0.0
    %2601 = vmatpush1.msra.mxu0 0.0
    %2602 = vmatprep.subr.mxu0 0.0
    %2603 = vmatpush1.msra.mxu0 0.0
    %2604 = vmatprep.subr.mxu0 0.0
    %2605 = vmatpush1.msra.mxu0 0.0
    %2606 = vmatprep.subr.mxu0 0.0
    %2607 = vmatpush1.msra.mxu0 0.0
    %2608 = vmatprep.subr.mxu0 0.0
    %2609 = vmatpush1.msra.mxu0 0.0
    %2610 = vmatprep.subr.mxu0 0.0
    %2611 = vmatpush1.msra.mxu0 0.0
    %2612 = vmatprep.subr.mxu0 0.0
    %2613 = vmatpush1.msra.mxu0 0.0
    %2614 = vmatprep.subr.mxu0 0.0
    %2615 = vmatpush1.msra.mxu0 0.0
    %2616 = vmatprep.subr.mxu0 0.0
    %2617 = vmatpush1.msra.mxu0 0.0
    %2618 = vmatprep.subr.mxu0 0.0
    %2619 = vmatpush1.msra.mxu0 0.0
    %2620 = vmatprep.subr.mxu0 0.0
    %2621 = vmatpush1.msra.mxu0 0.0
    %2622 = vmatprep.subr.mxu0 0.0
    %2623 = vmatpush1.msra.mxu0 0.0
    %2624 = vmatprep.subr.mxu0 0.0
    %2625 = vmatpush1.msra.mxu0 0.0
    %2626 = vmatprep.subr.mxu0 0.0
    %2627 = vmatpush1.msra.mxu0 0.0
    %2628 = vmatprep.subr.mxu0 0.0
    %2629 = vmatpush1.msra.mxu0 0.0
    %2630 = vmatprep.subr.mxu0 0.0
    %2631 = vmatpush1.msra.mxu0 0.0
    %2632 = vmatprep.subr.mxu0 0.0
    %2633 = vmatpush1.msra.mxu0 0.0
    %2634 = vmatprep.subr.mxu0 0.0
    %2635 = vmatpush1.msra.mxu0 0.0
    %2636 = vmatprep.subr.mxu0 0.0
    %2637 = vmatpush1.msra.mxu0 0.0
    %2638 = vmatprep.subr.mxu0 0.0
    %2639 = vmatpush1.msra.mxu0 0.0
    %2640 = vmatprep.subr.mxu0 0.0
    %2641 = vmatpush1.msra.mxu0 0.0
    %2642 = vmatprep.subr.mxu0 0.0
    %2643 = vmatpush1.msra.mxu0 0.0
    %2644 = vmatprep.subr.mxu0 0.0
    %2645 = vmatpush1.msra.mxu0 0.0
    %2646 = vmatprep.subr.mxu0 0.0
    %2647 = vmatpush1.msra.mxu0 0.0
    %2648 = vmatprep.subr.mxu0 0.0
    %2649 = vmatpush1.msra.mxu0 0.0
    %2650 = vmatprep.subr.mxu0 0.0
    %2651 = vmatpush1.msra.mxu0 0.0
    %2652 = vmatprep.mubr.f32.mxu0 0.0
    %2653 = vmatmul.mubr.f32.gmra.mrb[0].mxu0 %v2565
    %v2654 = vpop.f32.mrb[0].mxu0
    %v2655 = vadd.f32 %v2562, %v2654
    %v2656 = vpop.f32.mrb[0].mxu0
    %2657 = vmatprep.mubr.f32.mxu0 0.0
    %2658 = vmatmul.mubr.f32.gmra.mrb[0].mxu0 %v2568
    %v2659 = vpop.f32.mrb[0].mxu0
    %v2660 = vadd.f32 %v2562, %v2659
    %v2661 = vpop.f32.mrb[0].mxu0
    %2662 = vmatprep.mubr.f32.mxu0 0.0
    %2663 = vmatmul.mubr.f32.gmra.mrb[0].mxu0 %v2571
    %v2664 = vpop.f32.mrb[0].mxu0
    %v2665 = vadd.f32 %v2562, %v2664
    %v2666 = vpop.f32.mrb[0].mxu0
    %2667 = vmatprep.mubr.f32.mxu0 0.0
    %2668 = vmatmul.mubr.f32.gmra.mrb[0].mxu0 %v2574
    %v2669 = vpop.f32.mrb[0].mxu0
    %v2670 = vadd.f32 %v2562, %v2669
    %v2671 = vpop.f32.mrb[0].mxu0
    %2672 = vmatprep.mubr.f32.mxu0 0.0
    %2673 = vmatmul.mubr.f32.gmra.mrb[0].mxu0 %v2577
    %v2674 = vpop.f32.mrb[0].mxu0
    %v2675 = vadd.f32 %v2562, %v2674
    %v2676 = vpop.f32.mrb[0].mxu0
    %2677 = vmatprep.mubr.f32.mxu0 0.0
    %2678 = vmatmul.mubr.f32.gmra.mrb[0].mxu0 %v2580
    %v2679 = vpop.f32.mrb[0].mxu0
    %v2680 = vadd.f32 %v2562, %v2679
    %v2681 = vpop.f32.mrb[0].mxu0
    %2682 = vmatprep.mubr.f32.mxu0 0.0
    %2683 = vmatmul.mubr.f32.gmra.mrb[0].mxu0 %v2583
    %v2684 = vpop.f32.mrb[0].mxu0
    %v2685 = vadd.f32 %v2562, %v2684
    %v2686 = vpop.f32.mrb[0].mxu0
    %2687 = vmatprep.mubr.f32.mxu0 0.0
    %2688 = vmatmul.mubr.f32.gmra.mrb[0].mxu0 %v2586
    %v2689 = vpop.f32.mrb[0].mxu0
    %v2690 = vadd.f32 %v2562, %v2689
    %v2691 = vpop.f32.mrb[0].mxu0
    %2692 = vdwg.mxu0
    %2693 = vst [vmem:[#allocation8] sm:$0xff] %v2655
    %2694 = vst [vmem:[#allocation8 + $0x8] sm:$0xff] %v2660
    %2695 = vst [vmem:[#allocation8 + $0x10] sm:$0xff] %v2665
    %2696 = vst [vmem:[#allocation8 + $0x18] sm:$0xff] %v2670
    %2697 = vst [vmem:[#allocation8 + $0x20] sm:$0xff] %v2675
    %2698 = vst [vmem:[#allocation8 + $0x28] sm:$0xff] %v2680
    %2699 = vst [vmem:[#allocation8 + $0x30] sm:$0xff] %v2685
    %2700 = vst [vmem:[#allocation8 + $0x38] sm:$0xff] %v2690
    // Predicated region
    $region34: #{tpu_custom_call.1} parent=1 // pred_check
      _
    $region35: #{tpu_custom_call.1} parent=1 // pred_check_branch
      %2702 = sbr.rel (0) target = $region37
    $region36: #{tpu_custom_call.1} parent=1 // pred_region
      %s2704 = ssub.s32 1024, 1024
      %2705 = vsyncadd [#allocation4], %s2704
      %s2706 = sshll.u32 [#allocation8], 4
      %s2707 = int_to_ptr.vmem [resolvable:$true] %s2706
      %2712 = dma.vmem_to_hbm [thread:$0]  %s2707, 1024, %s5, [#allocation4], 128, 128, 8
    $region37: #{tpu_custom_call.1} parent=1 // pred_fallthru
      _
    // Predicated region
    $region38: #{tpu_custom_call.1} parent=1 // pred_check
      _
    $region39: #{tpu_custom_call.1} parent=1 // pred_check_branch
      %2714 = sbr.rel (0) target = $region41
    $region40: #{tpu_custom_call.1} parent=1 // pred_region
      %2715 = dma.done [#allocation4], 1024
    $region41: #{tpu_custom_call.1} parent=1 // pred_fallthru
      _
    %2716 = vsyncpa [#allocation3], 1
    %2717 = vsyncpa [#allocation6], 1
    %2718 = vsyncpa [#allocation4], 1

</llo_original>
